<compile_context>
chip_gen: v5e
topology: v5e:2x2
jax: 0.10.0
libtpu: 0.0.40
codegen_flags: <defaults>
</compile_context>

<pallas_src>
import math
from functools import partial

import jax
import jax.numpy as jnp
from jax.experimental import pallas as pl
from jax.experimental.pallas import tpu as pltpu  # noqa: F401  (TPU backend)


def _fused_net_kernel(x_ref, *refs, shortcut_flags, hidden_dim):
    """Whole network: 3 residual attention blocks + final linear + L2 normalize."""
    o_ref = refs[-1]
    wrefs = refs[:-1]

    B, S, Din = x_ref.shape
    H = hidden_dim
    inv_sqrt_h = 1.0 / math.sqrt(H)   # PyTorch scale uses x.size(-1) == hidden_dim

    x = x_ref[...].reshape(B * S, Din)                        # fold batch into rows

    idx = 0
    for has_sc in shortcut_flags:
        w1, b1 = wrefs[idx][...], wrefs[idx + 1][...]
        wqkv, bqkv = wrefs[idx + 2][...], wrefs[idx + 3][...]
        w2, b2 = wrefs[idx + 4][...], wrefs[idx + 5][...]
        idx += 6
        if has_sc:
            ws, bs = wrefs[idx][...], wrefs[idx + 1][...]
            idx += 2

        # linear1 + relu
        h = jnp.dot(x, w1, preferred_element_type=jnp.float32) + b1
        h = jnp.maximum(h, 0.0)                               # (B*S, H)

        # packed QKV projection: one matmul, static slices
        qkv = jnp.dot(h, wqkv, preferred_element_type=jnp.float32) + bqkv  # (B*S, 3H)
        q = qkv[:, :H].reshape(B, S, H)
        k = qkv[:, H:2 * H].reshape(B, S, H)
        v = qkv[:, 2 * H:].reshape(B, S, H)

        # batch-local self-attention (contract on last dims; no explicit k.T)
        s = jnp.einsum('bqd,bkd->bqk', q, k,
                       preferred_element_type=jnp.float32) * inv_sqrt_h    # (B,S,S)
        s = s - jnp.max(s, axis=-1, keepdims=True)
        p = jnp.exp(s)
        p = p * pl.reciprocal(jnp.sum(p, axis=-1, keepdims=True), approx=False)
        attn = jnp.einsum('bqk,bkd->bqd', p, v,
                          preferred_element_type=jnp.float32)              # (B,S,H)
        attn = attn.reshape(B * S, H)

        # residual shortcut (projected iff input_dim != hidden_dim)
        if has_sc:
            sc = jnp.dot(x, ws, preferred_element_type=jnp.float32) + bs
        else:
            sc = x

        # linear2 + relu
        out = jnp.dot(attn + sc, w2, preferred_element_type=jnp.float32) + b2
        x = jnp.maximum(out, 0.0)                             # (B*S, H)

    # final relu is a no-op (x already >= 0) -> dropped.
    wf, bf = wrefs[idx][...], wrefs[idx + 1][...]
    y = jnp.dot(x, wf, preferred_element_type=jnp.float32) + bf            # (B*S, O)

    # F.normalize(p=2, dim=-1, eps=1e-12): y / max(||y||_2, eps)
    norm = jnp.maximum(jnp.sqrt(jnp.sum(y * y, axis=-1, keepdims=True)), 1e-12)
    y = y * pl.reciprocal(norm, approx=False)
    o_ref[...] = y.reshape(B, S, -1)


def attention_residual_net(x, params):
    B, S, _ = x.shape
    H = params["blocks"][0]["w1"].shape[1]
    O = params["wf"].shape[1]

    flat = []
    flags = []
    for blk in params["blocks"]:
        flat += [blk["w1"], blk["b1"], blk["wqkv"], blk["bqkv"], blk["w2"], blk["b2"]]
        if blk["has_shortcut"]:
            flat += [blk["ws"], blk["bs"]]
        flags.append(blk["has_shortcut"])
    flat += [params["wf"], params["bf"]]

    kernel = partial(_fused_net_kernel, shortcut_flags=tuple(flags), hidden_dim=H)
    # No grid: one kernel invocation, every operand fully resident in VMEM
    # (total footprint ~35 KB, far below the scoped-VMEM limit on v5e/v6e/v7x).
    return pl.pallas_call(
        kernel,
        out_shape=jax.ShapeDtypeStruct((B, S, O), jnp.float32),
    )(x, *flat)


def init_params(key, input_dim, hidden_dim, output_dim, num_blocks=3):
    def linear(k, din, dout):
        kw, kb = jax.random.split(k)
        bound = 1.0 / math.sqrt(din)
        w = jax.random.uniform(kw, (din, dout), jnp.float32, -bound, bound)
        b = jax.random.uniform(kb, (1, dout), jnp.float32, -bound, bound)
        return w, b

    params = {"blocks": []}
    for i in range(num_blocks):
        din = input_dim if i == 0 else hidden_dim
        key, *ks = jax.random.split(key, 7)
        blk = {}
        blk["w1"], blk["b1"] = linear(ks[0], din, hidden_dim)
        wq, bq = linear(ks[1], hidden_dim, hidden_dim)
        wk, bk = linear(ks[2], hidden_dim, hidden_dim)
        wv, bv = linear(ks[3], hidden_dim, hidden_dim)
        # pack q/k/v into a single (H, 3H) weight for one MXU push
        blk["wqkv"] = jnp.concatenate([wq, wk, wv], axis=1)
        blk["bqkv"] = jnp.concatenate([bq, bk, bv], axis=1)
        blk["w2"], blk["b2"] = linear(ks[4], hidden_dim, hidden_dim)
        blk["has_shortcut"] = (din != hidden_dim)
        if blk["has_shortcut"]:
            blk["ws"], blk["bs"] = linear(ks[5], din, hidden_dim)
        params["blocks"].append(blk)
    key, kf = jax.random.split(key)
    params["wf"], params["bf"] = linear(kf, hidden_dim, output_dim)
    return params


def reference(x, params):
    """Pure-JAX reference mirroring the PyTorch forward pass."""
    H = params["blocks"][0]["w1"].shape[1]

    def softmax(s):
        s = s - jnp.max(s, axis=-1, keepdims=True)
        e = jnp.exp(s)
        return e / jnp.sum(e, axis=-1, keepdims=True)

    out = x
    for blk in params["blocks"]:
        h = jax.nn.relu(out @ blk["w1"] + blk["b1"])
        qkv = h @ blk["wqkv"] + blk["bqkv"]
        q, k, v = qkv[..., :H], qkv[..., H:2 * H], qkv[..., 2 * H:]
        attn = softmax(q @ jnp.swapaxes(k, -1, -2) / math.sqrt(H)) @ v
        sc = (out @ blk["ws"] + blk["bs"]) if blk["has_shortcut"] else out
        out = jax.nn.relu((attn + sc) @ blk["w2"] + blk["b2"])
    out = jax.nn.relu(out)
    y = out @ params["wf"] + params["bf"]
    norm = jnp.sqrt(jnp.sum(y * y, axis=-1, keepdims=True))
    return y / jnp.maximum(norm, 1e-12)


if __name__ == "__main__":
    B, S = 2, 8
    input_dim, hidden_dim, output_dim = 16, 32, 8

    key = jax.random.PRNGKey(0)
    kx, kp = jax.random.split(key)
    x = jax.random.normal(kx, (B, S, input_dim), dtype=jnp.float32)
    params = init_params(kp, input_dim, hidden_dim, output_dim, num_blocks=3)

    out = jax.block_until_ready(attention_residual_net(x, params))

    ref = reference(x, params)
    assert out.shape == (B, S, output_dim)
    assert jnp.allclose(out, ref, atol=1e-5, rtol=1e-5), float(jnp.max(jnp.abs(out - ref)))
    print("KERNEL_OK")
</pallas_src>

<mosaic_0001>
module attributes {stable_mosaic.version = 11 : i64} {
  func.func @_fused_net_kernel(%arg0: memref<2x8x16xf32, #tpu.memory_space<vmem>>, %arg1: memref<16x32xf32, #tpu.memory_space<vmem>>, %arg2: memref<1x32xf32, #tpu.memory_space<vmem>>, %arg3: memref<32x96xf32, #tpu.memory_space<vmem>>, %arg4: memref<1x96xf32, #tpu.memory_space<vmem>>, %arg5: memref<32x32xf32, #tpu.memory_space<vmem>>, %arg6: memref<1x32xf32, #tpu.memory_space<vmem>>, %arg7: memref<16x32xf32, #tpu.memory_space<vmem>>, %arg8: memref<1x32xf32, #tpu.memory_space<vmem>>, %arg9: memref<32x32xf32, #tpu.memory_space<vmem>>, %arg10: memref<1x32xf32, #tpu.memory_space<vmem>>, %arg11: memref<32x96xf32, #tpu.memory_space<vmem>>, %arg12: memref<1x96xf32, #tpu.memory_space<vmem>>, %arg13: memref<32x32xf32, #tpu.memory_space<vmem>>, %arg14: memref<1x32xf32, #tpu.memory_space<vmem>>, %arg15: memref<32x32xf32, #tpu.memory_space<vmem>>, %arg16: memref<1x32xf32, #tpu.memory_space<vmem>>, %arg17: memref<32x96xf32, #tpu.memory_space<vmem>>, %arg18: memref<1x96xf32, #tpu.memory_space<vmem>>, %arg19: memref<32x32xf32, #tpu.memory_space<vmem>>, %arg20: memref<1x32xf32, #tpu.memory_space<vmem>>, %arg21: memref<32x8xf32, #tpu.memory_space<vmem>>, %arg22: memref<1x8xf32, #tpu.memory_space<vmem>>, %arg23: memref<2x8x8xf32, #tpu.memory_space<vmem>>) attributes {dimension_semantics = [], scalar_prefetch = 0 : i64, scratch_operands = 0 : i64, tpu.core_type = #tpu.core_type<tc>} {
    %c0 = arith.constant 0 : index
    %c0_0 = arith.constant 0 : index
    %c0_1 = arith.constant 0 : index
    %0 = vector.load %arg0[%c0, %c0_0, %c0_1] : memref<2x8x16xf32, #tpu.memory_space<vmem>>, vector<2x8x16xf32>
    %1 = vector.shape_cast %0 : vector<2x8x16xf32> to vector<16x16xf32>
    %c0_2 = arith.constant 0 : index
    %c0_3 = arith.constant 0 : index
    %2 = vector.load %arg1[%c0_2, %c0_3] : memref<16x32xf32, #tpu.memory_space<vmem>>, vector<16x32xf32>
    %c0_4 = arith.constant 0 : index
    %c0_5 = arith.constant 0 : index
    %3 = vector.load %arg2[%c0_4, %c0_5] : memref<1x32xf32, #tpu.memory_space<vmem>>, vector<1x32xf32>
    %c0_6 = arith.constant 0 : index
    %c0_7 = arith.constant 0 : index
    %4 = vector.load %arg3[%c0_6, %c0_7] : memref<32x96xf32, #tpu.memory_space<vmem>>, vector<32x96xf32>
    %c0_8 = arith.constant 0 : index
    %c0_9 = arith.constant 0 : index
    %5 = vector.load %arg4[%c0_8, %c0_9] : memref<1x96xf32, #tpu.memory_space<vmem>>, vector<1x96xf32>
    %c0_10 = arith.constant 0 : index
    %c0_11 = arith.constant 0 : index
    %6 = vector.load %arg5[%c0_10, %c0_11] : memref<32x32xf32, #tpu.memory_space<vmem>>, vector<32x32xf32>
    %c0_12 = arith.constant 0 : index
    %c0_13 = arith.constant 0 : index
    %7 = vector.load %arg6[%c0_12, %c0_13] : memref<1x32xf32, #tpu.memory_space<vmem>>, vector<1x32xf32>
    %c0_14 = arith.constant 0 : index
    %c0_15 = arith.constant 0 : index
    %8 = vector.load %arg7[%c0_14, %c0_15] : memref<16x32xf32, #tpu.memory_space<vmem>>, vector<16x32xf32>
    %c0_16 = arith.constant 0 : index
    %c0_17 = arith.constant 0 : index
    %9 = vector.load %arg8[%c0_16, %c0_17] : memref<1x32xf32, #tpu.memory_space<vmem>>, vector<1x32xf32>
    %cst = arith.constant dense<0.000000e+00> : vector<16x32xf32>
    %10 = tpu.matmul %1, %2, %cst {dimension_numbers = #tpu.dot_dimension_numbers<[1], [0], [0], [1], [0, 0, 1, 1], [], []>} : vector<16x16xf32>, vector<16x32xf32>, vector<16x32xf32> -> vector<16x32xf32>
    %11 = vector.broadcast %3 : vector<1x32xf32> to vector<16x32xf32>
    %12 = arith.addf %10, %11 : vector<16x32xf32>
    %cst_18 = arith.constant 0.000000e+00 : f32
    %13 = vector.broadcast %cst_18 : f32 to vector<16x32xf32>
    %14 = arith.maximumf %12, %13 : vector<16x32xf32>
    %cst_19 = arith.constant dense<0.000000e+00> : vector<16x96xf32>
    %15 = tpu.matmul %14, %4, %cst_19 {dimension_numbers = #tpu.dot_dimension_numbers<[1], [0], [0], [1], [0, 0, 1, 1], [], []>} : vector<16x32xf32>, vector<32x96xf32>, vector<16x96xf32> -> vector<16x96xf32>
    %16 = vector.broadcast %5 : vector<1x96xf32> to vector<16x96xf32>
    %17 = arith.addf %15, %16 : vector<16x96xf32>
    %18 = vector.extract_strided_slice %17 {offsets = [0, 0], sizes = [16, 32], strides = [1, 1]} : vector<16x96xf32> to vector<16x32xf32>
    %19 = vector.shape_cast %18 : vector<16x32xf32> to vector<2x8x32xf32>
    %20 = vector.extract_strided_slice %17 {offsets = [0, 32], sizes = [16, 32], strides = [1, 1]} : vector<16x96xf32> to vector<16x32xf32>
    %21 = vector.shape_cast %20 : vector<16x32xf32> to vector<2x8x32xf32>
    %22 = vector.extract_strided_slice %17 {offsets = [0, 64], sizes = [16, 32], strides = [1, 1]} : vector<16x96xf32> to vector<16x32xf32>
    %23 = vector.shape_cast %22 : vector<16x32xf32> to vector<2x8x32xf32>
    "tpu.trace_start"() <{level = 10 : i32, message = "bqd,bkd->bqk"}> : () -> ()
    %cst_20 = arith.constant dense<0.000000e+00> : vector<2x8x8xf32>
    %24 = tpu.matmul %19, %21, %cst_20 {dimension_numbers = #tpu.dot_dimension_numbers<[2], [2], [1], [1], [0, 0, 0, 1, 1, 1], [0], [0]>} : vector<2x8x32xf32>, vector<2x8x32xf32>, vector<2x8x8xf32> -> vector<2x8x8xf32>
    "tpu.trace_stop"() : () -> ()
    %cst_21 = arith.constant 0.176776692 : f32
    %25 = vector.broadcast %cst_21 : f32 to vector<2x8x8xf32>
    %26 = arith.mulf %24, %25 : vector<2x8x8xf32>
    %cst_22 = arith.constant dense<0xFF800000> : vector<2x8xf32>
    %27 = vector.multi_reduction <maximumf>, %26, %cst_22 [2] : vector<2x8x8xf32> to vector<2x8xf32>
    %28 = vector.shape_cast %27 : vector<2x8xf32> to vector<2x8x1xf32>
    %29 = vector.broadcast %28 : vector<2x8x1xf32> to vector<2x8x8xf32>
    %30 = arith.subf %26, %29 : vector<2x8x8xf32>
    %31 = math.exp %30 : vector<2x8x8xf32>
    %cst_23 = arith.constant dense<0.000000e+00> : vector<2x8xf32>
    %32 = vector.multi_reduction <add>, %31, %cst_23 [2] : vector<2x8x8xf32> to vector<2x8xf32>
    %33 = vector.shape_cast %32 : vector<2x8xf32> to vector<2x8x1xf32>
    %34 = tpu.reciprocal %33 : vector<2x8x1xf32> -> vector<2x8x1xf32>
    %35 = vector.broadcast %34 : vector<2x8x1xf32> to vector<2x8x8xf32>
    %36 = arith.mulf %31, %35 : vector<2x8x8xf32>
    "tpu.trace_start"() <{level = 10 : i32, message = "bqk,bkd->bqd"}> : () -> ()
    %cst_24 = arith.constant dense<0.000000e+00> : vector<2x8x32xf32>
    %37 = tpu.matmul %36, %23, %cst_24 {dimension_numbers = #tpu.dot_dimension_numbers<[2], [1], [1], [2], [0, 0, 0, 1, 1, 2], [0], [0]>} : vector<2x8x8xf32>, vector<2x8x32xf32>, vector<2x8x32xf32> -> vector<2x8x32xf32>
    "tpu.trace_stop"() : () -> ()
    %38 = vector.shape_cast %37 : vector<2x8x32xf32> to vector<16x32xf32>
    %cst_25 = arith.constant dense<0.000000e+00> : vector<16x32xf32>
    %39 = tpu.matmul %1, %8, %cst_25 {dimension_numbers = #tpu.dot_dimension_numbers<[1], [0], [0], [1], [0, 0, 1, 1], [], []>} : vector<16x16xf32>, vector<16x32xf32>, vector<16x32xf32> -> vector<16x32xf32>
    %40 = vector.broadcast %9 : vector<1x32xf32> to vector<16x32xf32>
    %41 = arith.addf %39, %40 : vector<16x32xf32>
    %42 = arith.addf %38, %41 : vector<16x32xf32>
    %cst_26 = arith.constant dense<0.000000e+00> : vector<16x32xf32>
    %43 = tpu.matmul %42, %6, %cst_26 {dimension_numbers = #tpu.dot_dimension_numbers<[1], [0], [0], [1], [0, 0, 1, 1], [], []>} : vector<16x32xf32>, vector<32x32xf32>, vector<16x32xf32> -> vector<16x32xf32>
    %44 = vector.broadcast %7 : vector<1x32xf32> to vector<16x32xf32>
    %45 = arith.addf %43, %44 : vector<16x32xf32>
    %cst_27 = arith.constant 0.000000e+00 : f32
    %46 = vector.broadcast %cst_27 : f32 to vector<16x32xf32>
    %47 = arith.maximumf %45, %46 : vector<16x32xf32>
    %c0_28 = arith.constant 0 : index
    %c0_29 = arith.constant 0 : index
    %48 = vector.load %arg9[%c0_28, %c0_29] : memref<32x32xf32, #tpu.memory_space<vmem>>, vector<32x32xf32>
    %c0_30 = arith.constant 0 : index
    %c0_31 = arith.constant 0 : index
    %49 = vector.load %arg10[%c0_30, %c0_31] : memref<1x32xf32, #tpu.memory_space<vmem>>, vector<1x32xf32>
    %c0_32 = arith.constant 0 : index
    %c0_33 = arith.constant 0 : index
    %50 = vector.load %arg11[%c0_32, %c0_33] : memref<32x96xf32, #tpu.memory_space<vmem>>, vector<32x96xf32>
    %c0_34 = arith.constant 0 : index
    %c0_35 = arith.constant 0 : index
    %51 = vector.load %arg12[%c0_34, %c0_35] : memref<1x96xf32, #tpu.memory_space<vmem>>, vector<1x96xf32>
    %c0_36 = arith.constant 0 : index
    %c0_37 = arith.constant 0 : index
    %52 = vector.load %arg13[%c0_36, %c0_37] : memref<32x32xf32, #tpu.memory_space<vmem>>, vector<32x32xf32>
    %c0_38 = arith.constant 0 : index
    %c0_39 = arith.constant 0 : index
    %53 = vector.load %arg14[%c0_38, %c0_39] : memref<1x32xf32, #tpu.memory_space<vmem>>, vector<1x32xf32>
    %cst_40 = arith.constant dense<0.000000e+00> : vector<16x32xf32>
    %54 = tpu.matmul %47, %48, %cst_40 {dimension_numbers = #tpu.dot_dimension_numbers<[1], [0], [0], [1], [0, 0, 1, 1], [], []>} : vector<16x32xf32>, vector<32x32xf32>, vector<16x32xf32> -> vector<16x32xf32>
    %55 = vector.broadcast %49 : vector<1x32xf32> to vector<16x32xf32>
    %56 = arith.addf %54, %55 : vector<16x32xf32>
    %cst_41 = arith.constant 0.000000e+00 : f32
    %57 = vector.broadcast %cst_41 : f32 to vector<16x32xf32>
    %58 = arith.maximumf %56, %57 : vector<16x32xf32>
    %cst_42 = arith.constant dense<0.000000e+00> : vector<16x96xf32>
    %59 = tpu.matmul %58, %50, %cst_42 {dimension_numbers = #tpu.dot_dimension_numbers<[1], [0], [0], [1], [0, 0, 1, 1], [], []>} : vector<16x32xf32>, vector<32x96xf32>, vector<16x96xf32> -> vector<16x96xf32>
    %60 = vector.broadcast %51 : vector<1x96xf32> to vector<16x96xf32>
    %61 = arith.addf %59, %60 : vector<16x96xf32>
    %62 = vector.extract_strided_slice %61 {offsets = [0, 0], sizes = [16, 32], strides = [1, 1]} : vector<16x96xf32> to vector<16x32xf32>
    %63 = vector.shape_cast %62 : vector<16x32xf32> to vector<2x8x32xf32>
    %64 = vector.extract_strided_slice %61 {offsets = [0, 32], sizes = [16, 32], strides = [1, 1]} : vector<16x96xf32> to vector<16x32xf32>
    %65 = vector.shape_cast %64 : vector<16x32xf32> to vector<2x8x32xf32>
    %66 = vector.extract_strided_slice %61 {offsets = [0, 64], sizes = [16, 32], strides = [1, 1]} : vector<16x96xf32> to vector<16x32xf32>
    %67 = vector.shape_cast %66 : vector<16x32xf32> to vector<2x8x32xf32>
    "tpu.trace_start"() <{level = 10 : i32, message = "bqd,bkd->bqk"}> : () -> ()
    %cst_43 = arith.constant dense<0.000000e+00> : vector<2x8x8xf32>
    %68 = tpu.matmul %63, %65, %cst_43 {dimension_numbers = #tpu.dot_dimension_numbers<[2], [2], [1], [1], [0, 0, 0, 1, 1, 1], [0], [0]>} : vector<2x8x32xf32>, vector<2x8x32xf32>, vector<2x8x8xf32> -> vector<2x8x8xf32>
    "tpu.trace_stop"() : () -> ()
    %cst_44 = arith.constant 0.176776692 : f32
    %69 = vector.broadcast %cst_44 : f32 to vector<2x8x8xf32>
    %70 = arith.mulf %68, %69 : vector<2x8x8xf32>
    %cst_45 = arith.constant dense<0xFF800000> : vector<2x8xf32>
    %71 = vector.multi_reduction <maximumf>, %70, %cst_45 [2] : vector<2x8x8xf32> to vector<2x8xf32>
    %72 = vector.shape_cast %71 : vector<2x8xf32> to vector<2x8x1xf32>
    %73 = vector.broadcast %72 : vector<2x8x1xf32> to vector<2x8x8xf32>
    %74 = arith.subf %70, %73 : vector<2x8x8xf32>
    %75 = math.exp %74 : vector<2x8x8xf32>
    %cst_46 = arith.constant dense<0.000000e+00> : vector<2x8xf32>
    %76 = vector.multi_reduction <add>, %75, %cst_46 [2] : vector<2x8x8xf32> to vector<2x8xf32>
    %77 = vector.shape_cast %76 : vector<2x8xf32> to vector<2x8x1xf32>
    %78 = tpu.reciprocal %77 : vector<2x8x1xf32> -> vector<2x8x1xf32>
    %79 = vector.broadcast %78 : vector<2x8x1xf32> to vector<2x8x8xf32>
    %80 = arith.mulf %75, %79 : vector<2x8x8xf32>
    "tpu.trace_start"() <{level = 10 : i32, message = "bqk,bkd->bqd"}> : () -> ()
    %cst_47 = arith.constant dense<0.000000e+00> : vector<2x8x32xf32>
    %81 = tpu.matmul %80, %67, %cst_47 {dimension_numbers = #tpu.dot_dimension_numbers<[2], [1], [1], [2], [0, 0, 0, 1, 1, 2], [0], [0]>} : vector<2x8x8xf32>, vector<2x8x32xf32>, vector<2x8x32xf32> -> vector<2x8x32xf32>
    "tpu.trace_stop"() : () -> ()
    %82 = vector.shape_cast %81 : vector<2x8x32xf32> to vector<16x32xf32>
    %83 = arith.addf %82, %47 : vector<16x32xf32>
    %cst_48 = arith.constant dense<0.000000e+00> : vector<16x32xf32>
    %84 = tpu.matmul %83, %52, %cst_48 {dimension_numbers = #tpu.dot_dimension_numbers<[1], [0], [0], [1], [0, 0, 1, 1], [], []>} : vector<16x32xf32>, vector<32x32xf32>, vector<16x32xf32> -> vector<16x32xf32>
    %85 = vector.broadcast %53 : vector<1x32xf32> to vector<16x32xf32>
    %86 = arith.addf %84, %85 : vector<16x32xf32>
    %cst_49 = arith.constant 0.000000e+00 : f32
    %87 = vector.broadcast %cst_49 : f32 to vector<16x32xf32>
    %88 = arith.maximumf %86, %87 : vector<16x32xf32>
    %c0_50 = arith.constant 0 : index
    %c0_51 = arith.constant 0 : index
    %89 = vector.load %arg15[%c0_50, %c0_51] : memref<32x32xf32, #tpu.memory_space<vmem>>, vector<32x32xf32>
    %c0_52 = arith.constant 0 : index
    %c0_53 = arith.constant 0 : index
    %90 = vector.load %arg16[%c0_52, %c0_53] : memref<1x32xf32, #tpu.memory_space<vmem>>, vector<1x32xf32>
    %c0_54 = arith.constant 0 : index
    %c0_55 = arith.constant 0 : index
    %91 = vector.load %arg17[%c0_54, %c0_55] : memref<32x96xf32, #tpu.memory_space<vmem>>, vector<32x96xf32>
    %c0_56 = arith.constant 0 : index
    %c0_57 = arith.constant 0 : index
    %92 = vector.load %arg18[%c0_56, %c0_57] : memref<1x96xf32, #tpu.memory_space<vmem>>, vector<1x96xf32>
    %c0_58 = arith.constant 0 : index
    %c0_59 = arith.constant 0 : index
    %93 = vector.load %arg19[%c0_58, %c0_59] : memref<32x32xf32, #tpu.memory_space<vmem>>, vector<32x32xf32>
    %c0_60 = arith.constant 0 : index
    %c0_61 = arith.constant 0 : index
    %94 = vector.load %arg20[%c0_60, %c0_61] : memref<1x32xf32, #tpu.memory_space<vmem>>, vector<1x32xf32>
    %cst_62 = arith.constant dense<0.000000e+00> : vector<16x32xf32>
    %95 = tpu.matmul %88, %89, %cst_62 {dimension_numbers = #tpu.dot_dimension_numbers<[1], [0], [0], [1], [0, 0, 1, 1], [], []>} : vector<16x32xf32>, vector<32x32xf32>, vector<16x32xf32> -> vector<16x32xf32>
    %96 = vector.broadcast %90 : vector<1x32xf32> to vector<16x32xf32>
    %97 = arith.addf %95, %96 : vector<16x32xf32>
    %cst_63 = arith.constant 0.000000e+00 : f32
    %98 = vector.broadcast %cst_63 : f32 to vector<16x32xf32>
    %99 = arith.maximumf %97, %98 : vector<16x32xf32>
    %cst_64 = arith.constant dense<0.000000e+00> : vector<16x96xf32>
    %100 = tpu.matmul %99, %91, %cst_64 {dimension_numbers = #tpu.dot_dimension_numbers<[1], [0], [0], [1], [0, 0, 1, 1], [], []>} : vector<16x32xf32>, vector<32x96xf32>, vector<16x96xf32> -> vector<16x96xf32>
    %101 = vector.broadcast %92 : vector<1x96xf32> to vector<16x96xf32>
    %102 = arith.addf %100, %101 : vector<16x96xf32>
    %103 = vector.extract_strided_slice %102 {offsets = [0, 0], sizes = [16, 32], strides = [1, 1]} : vector<16x96xf32> to vector<16x32xf32>
    %104 = vector.shape_cast %103 : vector<16x32xf32> to vector<2x8x32xf32>
    %105 = vector.extract_strided_slice %102 {offsets = [0, 32], sizes = [16, 32], strides = [1, 1]} : vector<16x96xf32> to vector<16x32xf32>
    %106 = vector.shape_cast %105 : vector<16x32xf32> to vector<2x8x32xf32>
    %107 = vector.extract_strided_slice %102 {offsets = [0, 64], sizes = [16, 32], strides = [1, 1]} : vector<16x96xf32> to vector<16x32xf32>
    %108 = vector.shape_cast %107 : vector<16x32xf32> to vector<2x8x32xf32>
    "tpu.trace_start"() <{level = 10 : i32, message = "bqd,bkd->bqk"}> : () -> ()
    %cst_65 = arith.constant dense<0.000000e+00> : vector<2x8x8xf32>
    %109 = tpu.matmul %104, %106, %cst_65 {dimension_numbers = #tpu.dot_dimension_numbers<[2], [2], [1], [1], [0, 0, 0, 1, 1, 1], [0], [0]>} : vector<2x8x32xf32>, vector<2x8x32xf32>, vector<2x8x8xf32> -> vector<2x8x8xf32>
    "tpu.trace_stop"() : () -> ()
    %cst_66 = arith.constant 0.176776692 : f32
    %110 = vector.broadcast %cst_66 : f32 to vector<2x8x8xf32>
    %111 = arith.mulf %109, %110 : vector<2x8x8xf32>
    %cst_67 = arith.constant dense<0xFF800000> : vector<2x8xf32>
    %112 = vector.multi_reduction <maximumf>, %111, %cst_67 [2] : vector<2x8x8xf32> to vector<2x8xf32>
    %113 = vector.shape_cast %112 : vector<2x8xf32> to vector<2x8x1xf32>
    %114 = vector.broadcast %113 : vector<2x8x1xf32> to vector<2x8x8xf32>
    %115 = arith.subf %111, %114 : vector<2x8x8xf32>
    %116 = math.exp %115 : vector<2x8x8xf32>
    %cst_68 = arith.constant dense<0.000000e+00> : vector<2x8xf32>
    %117 = vector.multi_reduction <add>, %116, %cst_68 [2] : vector<2x8x8xf32> to vector<2x8xf32>
    %118 = vector.shape_cast %117 : vector<2x8xf32> to vector<2x8x1xf32>
    %119 = tpu.reciprocal %118 : vector<2x8x1xf32> -> vector<2x8x1xf32>
    %120 = vector.broadcast %119 : vector<2x8x1xf32> to vector<2x8x8xf32>
    %121 = arith.mulf %116, %120 : vector<2x8x8xf32>
    "tpu.trace_start"() <{level = 10 : i32, message = "bqk,bkd->bqd"}> : () -> ()
    %cst_69 = arith.constant dense<0.000000e+00> : vector<2x8x32xf32>
    %122 = tpu.matmul %121, %108, %cst_69 {dimension_numbers = #tpu.dot_dimension_numbers<[2], [1], [1], [2], [0, 0, 0, 1, 1, 2], [0], [0]>} : vector<2x8x8xf32>, vector<2x8x32xf32>, vector<2x8x32xf32> -> vector<2x8x32xf32>
    "tpu.trace_stop"() : () -> ()
    %123 = vector.shape_cast %122 : vector<2x8x32xf32> to vector<16x32xf32>
    %124 = arith.addf %123, %88 : vector<16x32xf32>
    %cst_70 = arith.constant dense<0.000000e+00> : vector<16x32xf32>
    %125 = tpu.matmul %124, %93, %cst_70 {dimension_numbers = #tpu.dot_dimension_numbers<[1], [0], [0], [1], [0, 0, 1, 1], [], []>} : vector<16x32xf32>, vector<32x32xf32>, vector<16x32xf32> -> vector<16x32xf32>
    %126 = vector.broadcast %94 : vector<1x32xf32> to vector<16x32xf32>
    %127 = arith.addf %125, %126 : vector<16x32xf32>
    %cst_71 = arith.constant 0.000000e+00 : f32
    %128 = vector.broadcast %cst_71 : f32 to vector<16x32xf32>
    %129 = arith.maximumf %127, %128 : vector<16x32xf32>
    %c0_72 = arith.constant 0 : index
    %c0_73 = arith.constant 0 : index
    %130 = vector.load %arg21[%c0_72, %c0_73] : memref<32x8xf32, #tpu.memory_space<vmem>>, vector<32x8xf32>
    %c0_74 = arith.constant 0 : index
    %c0_75 = arith.constant 0 : index
    %131 = vector.load %arg22[%c0_74, %c0_75] : memref<1x8xf32, #tpu.memory_space<vmem>>, vector<1x8xf32>
    %cst_76 = arith.constant dense<0.000000e+00> : vector<16x8xf32>
    %132 = tpu.matmul %129, %130, %cst_76 {dimension_numbers = #tpu.dot_dimension_numbers<[1], [0], [0], [1], [0, 0, 1, 1], [], []>} : vector<16x32xf32>, vector<32x8xf32>, vector<16x8xf32> -> vector<16x8xf32>
    %133 = vector.broadcast %131 : vector<1x8xf32> to vector<16x8xf32>
    %134 = arith.addf %132, %133 : vector<16x8xf32>
    %135 = arith.mulf %134, %134 : vector<16x8xf32>
    %cst_77 = arith.constant dense<0.000000e+00> : vector<16xf32>
    %136 = vector.multi_reduction <add>, %135, %cst_77 [1] : vector<16x8xf32> to vector<16xf32>
    %137 = vector.shape_cast %136 : vector<16xf32> to vector<16x1xf32>
    %138 = math.sqrt %137 : vector<16x1xf32>
    %cst_78 = arith.constant 9.99999996E-13 : f32
    %139 = vector.broadcast %cst_78 : f32 to vector<16x1xf32>
    %140 = arith.maximumf %138, %139 : vector<16x1xf32>
    %141 = tpu.reciprocal %140 : vector<16x1xf32> -> vector<16x1xf32>
    %142 = vector.broadcast %141 : vector<16x1xf32> to vector<16x8xf32>
    %143 = arith.mulf %134, %142 : vector<16x8xf32>
    %144 = vector.shape_cast %143 : vector<16x8xf32> to vector<2x8x8xf32>
    %c0_79 = arith.constant 0 : index
    %c0_80 = arith.constant 0 : index
    %c0_81 = arith.constant 0 : index
    %145 = vector.load %arg23[%c0_79, %c0_80, %c0_81] : memref<2x8x8xf32, #tpu.memory_space<vmem>>, vector<2x8x8xf32>
    tpu.vector_store %arg23[%c0_79, %c0_80, %c0_81], %144 {strides = array<i32>} : memref<2x8x8xf32, #tpu.memory_space<vmem>>, vector<2x8x8xf32>,
    return
  }
}

</mosaic_0001>

<llo_original>
// kernel: tpu_custom_call.1
$region0: #{tpu_custom_call.1}
  #allocation0 [shape = 'u32[]', space=smem, size = 0x4, offset = 0x4, fixed_abs, tag = 'smem constant byte address 0x4 - core index']
  #allocation1 [shape = 'u32[72,128]{1,0:T(1,128)}', space=vmem, size = 0x9000, scoped, tag = 'internal scratch']
  %s0 = inlined_call_operand.hbm [shape: f32[2,8,16], index: 0, kind: input, shape index: {}]
  %s1 = inlined_call_operand.hbm [shape: f32[16,32], index: 1, kind: input, shape index: {}]
  %s2 = inlined_call_operand.vmem [shape: f32[1,32], index: 2, kind: input, shape index: {}]
  %s3 = inlined_call_operand.vmem [shape: f32[32,96], index: 3, kind: input, shape index: {}]
  %s4 = inlined_call_operand.vmem [shape: f32[1,96], index: 4, kind: input, shape index: {}]
  %s5 = inlined_call_operand.hbm [shape: f32[32,32], index: 5, kind: input, shape index: {}]
  %s6 = inlined_call_operand.vmem [shape: f32[1,32], index: 6, kind: input, shape index: {}]
  %s7 = inlined_call_operand.hbm [shape: f32[16,32], index: 7, kind: input, shape index: {}]
  %s8 = inlined_call_operand.vmem [shape: f32[1,32], index: 8, kind: input, shape index: {}]
  %s9 = inlined_call_operand.hbm [shape: f32[32,32], index: 9, kind: input, shape index: {}]
  %s10 = inlined_call_operand.vmem [shape: f32[1,32], index: 10, kind: input, shape index: {}]
  %s11 = inlined_call_operand.hbm [shape: f32[32,96], index: 11, kind: input, shape index: {}]
  %s12 = inlined_call_operand.vmem [shape: f32[1,96], index: 12, kind: input, shape index: {}]
  %s13 = inlined_call_operand.hbm [shape: f32[32,32], index: 13, kind: input, shape index: {}]
  %s14 = inlined_call_operand.vmem [shape: f32[1,32], index: 14, kind: input, shape index: {}]
  %s15 = inlined_call_operand.hbm [shape: f32[32,32], index: 15, kind: input, shape index: {}]
  %s16 = inlined_call_operand.vmem [shape: f32[1,32], index: 16, kind: input, shape index: {}]
  %s17 = inlined_call_operand.hbm [shape: f32[32,96], index: 17, kind: input, shape index: {}]
  %s18 = inlined_call_operand.vmem [shape: f32[1,96], index: 18, kind: input, shape index: {}]
  %s19 = inlined_call_operand.hbm [shape: f32[32,32], index: 19, kind: input, shape index: {}]
  %s20 = inlined_call_operand.vmem [shape: f32[1,32], index: 20, kind: input, shape index: {}]
  %s21 = inlined_call_operand.vmem [shape: f32[32,8], index: 21, kind: input, shape index: {}]
  %s22 = inlined_call_operand.vmem [shape: f32[1,8], index: 22, kind: input, shape index: {}]
  %s23 = inlined_call_operand.hbm [shape: f32[2,8,8], index: 23, kind: output, shape index: {}]
  %s24 = sld [smem:[#allocation0]]
  $region142: #{tpu_custom_call.1} parent=0
    _
  %s26 = ssub.s32 1, %s24
  %s27 = scalar_select 0, %s26, %s24
  $region1: #{tpu_custom_call.1} parent=0
    #allocation2 [shape = 'u8[8192]{0}', space=vmem, size = 0x2000, scoped, tag = 'input window, operand 0, single buffered']
    #allocation3 [shape = 's32[1]{0}', space=sflag, size = 0x4, scoped, tag = 'scoped memory for tpu_custom_call.1']
    #allocation4 [shape = 's32[1]{0}', space=sflag, size = 0x4, scoped, tag = 'scoped memory for tpu_custom_call.1']
    #allocation5 [shape = 'u8[8192]{0}', space=vmem, size = 0x2000, scoped, tag = 'input window, operand 1, single buffered']
    #allocation6 [shape = 's32[1]{0}', space=sflag, size = 0x4, scoped, tag = 'scoped memory for tpu_custom_call.1']
    #allocation7 [shape = 'u8[16384]{0}', space=vmem, size = 0x4000, scoped, tag = 'input window, operand 5, single buffered']
    #allocation8 [shape = 'u8[8192]{0}', space=vmem, size = 0x2000, scoped, tag = 'input window, operand 7, single buffered']
    #allocation9 [shape = 's32[1]{0}', space=sflag, size = 0x4, scoped, tag = 'scoped memory for tpu_custom_call.1']
    #allocation10 [shape = 'u8[16384]{0}', space=vmem, size = 0x4000, scoped, tag = 'input window, operand 9, single buffered']
    #allocation11 [shape = 'u8[16384]{0}', space=vmem, size = 0x4000, scoped, tag = 'input window, operand 11, single buffered']
    #allocation12 [shape = 's32[1]{0}', space=sflag, size = 0x4, scoped, tag = 'scoped memory for tpu_custom_call.1']
    #allocation13 [shape = 'u8[16384]{0}', space=vmem, size = 0x4000, scoped, tag = 'input window, operand 13, single buffered']
    #allocation14 [shape = 'u8[16384]{0}', space=vmem, size = 0x4000, scoped, tag = 'input window, operand 15, single buffered']
    #allocation15 [shape = 's32[1]{0}', space=sflag, size = 0x4, scoped, tag = 'scoped memory for tpu_custom_call.1']
    #allocation16 [shape = 'u8[16384]{0}', space=vmem, size = 0x4000, scoped, tag = 'input window, operand 17, single buffered']
    #allocation17 [shape = 'u8[16384]{0}', space=vmem, size = 0x4000, scoped, tag = 'input window, operand 19, single buffered']
    #allocation18 [shape = 's32[1]{0}', space=sflag, size = 0x4, scoped, tag = 'scoped memory for tpu_custom_call.1']
    #allocation19 [shape = 'u8[8192]{0}', space=vmem, size = 0x2000, scoped, tag = 'output window, operand 0, single buffered']
    %28 = vsyncpa [#allocation3], 0
    %29 = vsyncpa [#allocation6], 0
    %30 = vsyncpa [#allocation9], 0
    %31 = vsyncpa [#allocation12], 0
    %32 = vsyncpa [#allocation15], 0
    %33 = vsyncpa [#allocation18], 0
    %34 = vsyncpa [#allocation4], 0
    // Predicated region
    $region2: #{tpu_custom_call.1} parent=1 // pred_check
      _
    $region3: #{tpu_custom_call.1} parent=1 // pred_check_branch
      %36 = sbr.rel (0) target = $region5
    $region4: #{tpu_custom_call.1} parent=1 // pred_region
      %38 = vsyncadd [#allocation3], 0
      %s39 = sshll.u32 %s0, 4
      %s40 = int_to_ptr.hbm [resolvable:$true] %s39
      %s41 = sshll.u32 [#allocation2], 4
      %s42 = int_to_ptr.vmem [resolvable:$true] %s41
      %47 = dma.hbm_to_vmem [thread:$0]  %s40, 256, %s42, [#allocation3], 128, 128, 8
    $region5: #{tpu_custom_call.1} parent=1 // pred_fallthru
      _
    // Predicated region
    $region6: #{tpu_custom_call.1} parent=1 // pred_check
      _
    $region7: #{tpu_custom_call.1} parent=1 // pred_check_branch
      %49 = sbr.rel (0) target = $region9
    $region8: #{tpu_custom_call.1} parent=1 // pred_region
      %51 = vsyncadd [#allocation6], 0
      %s52 = sshll.u32 %s1, 4
      %s53 = int_to_ptr.hbm [resolvable:$true] %s52
      %s54 = sshll.u32 [#allocation5], 4
      %s55 = int_to_ptr.vmem [resolvable:$true] %s54
      %60 = dma.hbm_to_vmem [thread:$0]  %s53, 256, %s55, [#allocation6], 128, 128, 8
    $region9: #{tpu_custom_call.1} parent=1 // pred_fallthru
      _
    // Predicated region
    $region10: #{tpu_custom_call.1} parent=1 // pred_check
      _
    $region11: #{tpu_custom_call.1} parent=1 // pred_check_branch
      %62 = sbr.rel (0) target = $region13
    $region12: #{tpu_custom_call.1} parent=1 // pred_region
      _
    $region13: #{tpu_custom_call.1} parent=1 // pred_fallthru
      _
    // Predicated region
    $region14: #{tpu_custom_call.1} parent=1 // pred_check
      _
    $region15: #{tpu_custom_call.1} parent=1 // pred_check_branch
      %64 = sbr.rel (0) target = $region17
    $region16: #{tpu_custom_call.1} parent=1 // pred_region
      _
    $region17: #{tpu_custom_call.1} parent=1 // pred_fallthru
      _
    // Predicated region
    $region18: #{tpu_custom_call.1} parent=1 // pred_check
      _
    $region19: #{tpu_custom_call.1} parent=1 // pred_check_branch
      %66 = sbr.rel (0) target = $region21
    $region20: #{tpu_custom_call.1} parent=1 // pred_region
      _
    $region21: #{tpu_custom_call.1} parent=1 // pred_fallthru
      _
    // Predicated region
    $region22: #{tpu_custom_call.1} parent=1 // pred_check
      _
    $region23: #{tpu_custom_call.1} parent=1 // pred_check_branch
      %68 = sbr.rel (0) target = $region25
    $region24: #{tpu_custom_call.1} parent=1 // pred_region
      %70 = vsyncadd [#allocation6], 0
      %s71 = sshll.u32 %s5, 4
      %s72 = int_to_ptr.hbm [resolvable:$true] %s71
      %s73 = sshll.u32 [#allocation7], 4
      %s74 = int_to_ptr.vmem [resolvable:$true] %s73
      %79 = dma.hbm_to_vmem [thread:$0]  %s72, 512, %s74, [#allocation6], 128, 128, 8
    $region25: #{tpu_custom_call.1} parent=1 // pred_fallthru
      _
    // Predicated region
    $region26: #{tpu_custom_call.1} parent=1 // pred_check
      _
    $region27: #{tpu_custom_call.1} parent=1 // pred_check_branch
      %81 = sbr.rel (0) target = $region29
    $region28: #{tpu_custom_call.1} parent=1 // pred_region
      _
    $region29: #{tpu_custom_call.1} parent=1 // pred_fallthru
      _
    // Predicated region
    $region30: #{tpu_custom_call.1} parent=1 // pred_check
      _
    $region31: #{tpu_custom_call.1} parent=1 // pred_check_branch
      %83 = sbr.rel (0) target = $region33
    $region32: #{tpu_custom_call.1} parent=1 // pred_region
      %85 = vsyncadd [#allocation9], 0
      %s86 = sshll.u32 %s7, 4
      %s87 = int_to_ptr.hbm [resolvable:$true] %s86
      %s88 = sshll.u32 [#allocation8], 4
      %s89 = int_to_ptr.vmem [resolvable:$true] %s88
      %94 = dma.hbm_to_vmem [thread:$0]  %s87, 256, %s89, [#allocation9], 128, 128, 8
    $region33: #{tpu_custom_call.1} parent=1 // pred_fallthru
      _
    // Predicated region
    $region34: #{tpu_custom_call.1} parent=1 // pred_check
      _
    $region35: #{tpu_custom_call.1} parent=1 // pred_check_branch
      %96 = sbr.rel (0) target = $region37
    $region36: #{tpu_custom_call.1} parent=1 // pred_region
      _
    $region37: #{tpu_custom_call.1} parent=1 // pred_fallthru
      _
    // Predicated region
    $region38: #{tpu_custom_call.1} parent=1 // pred_check
      _
    $region39: #{tpu_custom_call.1} parent=1 // pred_check_branch
      %98 = sbr.rel (0) target = $region41
    $region40: #{tpu_custom_call.1} parent=1 // pred_region
      %100 = vsyncadd [#allocation9], 0
      %s101 = sshll.u32 %s9, 4
      %s102 = int_to_ptr.hbm [resolvable:$true] %s101
      %s103 = sshll.u32 [#allocation10], 4
      %s104 = int_to_ptr.vmem [resolvable:$true] %s103
      %109 = dma.hbm_to_vmem [thread:$0]  %s102, 512, %s104, [#allocation9], 128, 128, 8
    $region41: #{tpu_custom_call.1} parent=1 // pred_fallthru
      _
    // Predicated region
    $region42: #{tpu_custom_call.1} parent=1 // pred_check
      _
    $region43: #{tpu_custom_call.1} parent=1 // pred_check_branch
      %111 = sbr.rel (0) target = $region45
    $region44: #{tpu_custom_call.1} parent=1 // pred_region
      _
    $region45: #{tpu_custom_call.1} parent=1 // pred_fallthru
      _
    // Predicated region
    $region46: #{tpu_custom_call.1} parent=1 // pred_check
      _
    $region47: #{tpu_custom_call.1} parent=1 // pred_check_branch
      %113 = sbr.rel (0) target = $region49
    $region48: #{tpu_custom_call.1} parent=1 // pred_region
      %115 = vsyncadd [#allocation12], 0
      %s116 = sshll.u32 %s11, 4
      %s117 = int_to_ptr.hbm [resolvable:$true] %s116
      %s118 = sshll.u32 [#allocation11], 4
      %s119 = int_to_ptr.vmem [resolvable:$true] %s118
      %124 = dma.hbm_to_vmem [thread:$0]  %s117, 512, %s119, [#allocation12], 128, 128, 8
    $region49: #{tpu_custom_call.1} parent=1 // pred_fallthru
      _
    // Predicated region
    $region50: #{tpu_custom_call.1} parent=1 // pred_check
      _
    $region51: #{tpu_custom_call.1} parent=1 // pred_check_branch
      %126 = sbr.rel (0) target = $region53
    $region52: #{tpu_custom_call.1} parent=1 // pred_region
      _
    $region53: #{tpu_custom_call.1} parent=1 // pred_fallthru
      _
    // Predicated region
    $region54: #{tpu_custom_call.1} parent=1 // pred_check
      _
    $region55: #{tpu_custom_call.1} parent=1 // pred_check_branch
      %128 = sbr.rel (0) target = $region57
    $region56: #{tpu_custom_call.1} parent=1 // pred_region
      %130 = vsyncadd [#allocation12], 0
      %s131 = sshll.u32 %s13, 4
      %s132 = int_to_ptr.hbm [resolvable:$true] %s131
      %s133 = sshll.u32 [#allocation13], 4
      %s134 = int_to_ptr.vmem [resolvable:$true] %s133
      %139 = dma.hbm_to_vmem [thread:$0]  %s132, 512, %s134, [#allocation12], 128, 128, 8
    $region57: #{tpu_custom_call.1} parent=1 // pred_fallthru
      _
    // Predicated region
    $region58: #{tpu_custom_call.1} parent=1 // pred_check
      _
    $region59: #{tpu_custom_call.1} parent=1 // pred_check_branch
      %141 = sbr.rel (0) target = $region61
    $region60: #{tpu_custom_call.1} parent=1 // pred_region
      _
    $region61: #{tpu_custom_call.1} parent=1 // pred_fallthru
      _
    // Predicated region
    $region62: #{tpu_custom_call.1} parent=1 // pred_check
      _
    $region63: #{tpu_custom_call.1} parent=1 // pred_check_branch
      %143 = sbr.rel (0) target = $region65
    $region64: #{tpu_custom_call.1} parent=1 // pred_region
      %145 = vsyncadd [#allocation15], 0
      %s146 = sshll.u32 %s15, 4
      %s147 = int_to_ptr.hbm [resolvable:$true] %s146
      %s148 = sshll.u32 [#allocation14], 4
      %s149 = int_to_ptr.vmem [resolvable:$true] %s148
      %154 = dma.hbm_to_vmem [thread:$0]  %s147, 512, %s149, [#allocation15], 128, 128, 8
    $region65: #{tpu_custom_call.1} parent=1 // pred_fallthru
      _
    // Predicated region
    $region66: #{tpu_custom_call.1} parent=1 // pred_check
      _
    $region67: #{tpu_custom_call.1} parent=1 // pred_check_branch
      %156 = sbr.rel (0) target = $region69
    $region68: #{tpu_custom_call.1} parent=1 // pred_region
      _
    $region69: #{tpu_custom_call.1} parent=1 // pred_fallthru
      _
    // Predicated region
    $region70: #{tpu_custom_call.1} parent=1 // pred_check
      _
    $region71: #{tpu_custom_call.1} parent=1 // pred_check_branch
      %158 = sbr.rel (0) target = $region73
    $region72: #{tpu_custom_call.1} parent=1 // pred_region
      %160 = vsyncadd [#allocation15], 0
      %s161 = sshll.u32 %s17, 4
      %s162 = int_to_ptr.hbm [resolvable:$true] %s161
      %s163 = sshll.u32 [#allocation16], 4
      %s164 = int_to_ptr.vmem [resolvable:$true] %s163
      %169 = dma.hbm_to_vmem [thread:$0]  %s162, 512, %s164, [#allocation15], 128, 128, 8
    $region73: #{tpu_custom_call.1} parent=1 // pred_fallthru
      _
    // Predicated region
    $region74: #{tpu_custom_call.1} parent=1 // pred_check
      _
    $region75: #{tpu_custom_call.1} parent=1 // pred_check_branch
      %171 = sbr.rel (0) target = $region77
    $region76: #{tpu_custom_call.1} parent=1 // pred_region
      _
    $region77: #{tpu_custom_call.1} parent=1 // pred_fallthru
      _
    // Predicated region
    $region78: #{tpu_custom_call.1} parent=1 // pred_check
      _
    $region79: #{tpu_custom_call.1} parent=1 // pred_check_branch
      %173 = sbr.rel (0) target = $region81
    $region80: #{tpu_custom_call.1} parent=1 // pred_region
      %175 = vsyncadd [#allocation18], 0
      %s176 = sshll.u32 %s19, 4
      %s177 = int_to_ptr.hbm [resolvable:$true] %s176
      %s178 = sshll.u32 [#allocation17], 4
      %s179 = int_to_ptr.vmem [resolvable:$true] %s178
      %184 = dma.hbm_to_vmem [thread:$0]  %s177, 512, %s179, [#allocation18], 128, 128, 8
    $region81: #{tpu_custom_call.1} parent=1 // pred_fallthru
      _
    // Predicated region
    $region82: #{tpu_custom_call.1} parent=1 // pred_check
      _
    $region83: #{tpu_custom_call.1} parent=1 // pred_check_branch
      %186 = sbr.rel (0) target = $region85
    $region84: #{tpu_custom_call.1} parent=1 // pred_region
      _
    $region85: #{tpu_custom_call.1} parent=1 // pred_fallthru
      _
    // Predicated region
    $region86: #{tpu_custom_call.1} parent=1 // pred_check
      _
    $region87: #{tpu_custom_call.1} parent=1 // pred_check_branch
      %188 = sbr.rel (0) target = $region89
    $region88: #{tpu_custom_call.1} parent=1 // pred_region
      _
    $region89: #{tpu_custom_call.1} parent=1 // pred_fallthru
      _
    // Predicated region
    $region90: #{tpu_custom_call.1} parent=1 // pred_check
      _
    $region91: #{tpu_custom_call.1} parent=1 // pred_check_branch
      %190 = sbr.rel (0) target = $region93
    $region92: #{tpu_custom_call.1} parent=1 // pred_region
      _
    $region93: #{tpu_custom_call.1} parent=1 // pred_fallthru
      _
    // Predicated region
    $region94: #{tpu_custom_call.1} parent=1 // pred_check
      _
    $region95: #{tpu_custom_call.1} parent=1 // pred_check_branch
      %192 = sbr.rel (0) target = $region97
    $region96: #{tpu_custom_call.1} parent=1 // pred_region
      %194 = dma.done [#allocation3], 256
    $region97: #{tpu_custom_call.1} parent=1 // pred_fallthru
      _
    // Predicated region
    $region98: #{tpu_custom_call.1} parent=1 // pred_check
      _
    $region99: #{tpu_custom_call.1} parent=1 // pred_check_branch
      %196 = sbr.rel (0) target = $region101
    $region100: #{tpu_custom_call.1} parent=1 // pred_region
      %198 = dma.done [#allocation6], 256
    $region101: #{tpu_custom_call.1} parent=1 // pred_fallthru
      _
    // Predicated region
    $region102: #{tpu_custom_call.1} parent=1 // pred_check
      _
    $region103: #{tpu_custom_call.1} parent=1 // pred_check_branch
      %200 = sbr.rel (0) target = $region105
    $region104: #{tpu_custom_call.1} parent=1 // pred_region
      %202 = dma.done [#allocation6], 512
    $region105: #{tpu_custom_call.1} parent=1 // pred_fallthru
      _
    // Predicated region
    $region106: #{tpu_custom_call.1} parent=1 // pred_check
      _
    $region107: #{tpu_custom_call.1} parent=1 // pred_check_branch
      %204 = sbr.rel (0) target = $region109
    $region108: #{tpu_custom_call.1} parent=1 // pred_region
      %206 = dma.done [#allocation9], 256
    $region109: #{tpu_custom_call.1} parent=1 // pred_fallthru
      _
    // Predicated region
    $region110: #{tpu_custom_call.1} parent=1 // pred_check
      _
    $region111: #{tpu_custom_call.1} parent=1 // pred_check_branch
      %208 = sbr.rel (0) target = $region113
    $region112: #{tpu_custom_call.1} parent=1 // pred_region
      %210 = dma.done [#allocation9], 512
    $region113: #{tpu_custom_call.1} parent=1 // pred_fallthru
      _
    // Predicated region
    $region114: #{tpu_custom_call.1} parent=1 // pred_check
      _
    $region115: #{tpu_custom_call.1} parent=1 // pred_check_branch
      %212 = sbr.rel (0) target = $region117
    $region116: #{tpu_custom_call.1} parent=1 // pred_region
      %214 = dma.done [#allocation12], 512
    $region117: #{tpu_custom_call.1} parent=1 // pred_fallthru
      _
    // Predicated region
    $region118: #{tpu_custom_call.1} parent=1 // pred_check
      _
    $region119: #{tpu_custom_call.1} parent=1 // pred_check_branch
      %216 = sbr.rel (0) target = $region121
    $region120: #{tpu_custom_call.1} parent=1 // pred_region
      %218 = dma.done [#allocation12], 512
    $region121: #{tpu_custom_call.1} parent=1 // pred_fallthru
      _
    // Predicated region
    $region122: #{tpu_custom_call.1} parent=1 // pred_check
      _
    $region123: #{tpu_custom_call.1} parent=1 // pred_check_branch
      %220 = sbr.rel (0) target = $region125
    $region124: #{tpu_custom_call.1} parent=1 // pred_region
      %222 = dma.done [#allocation15], 512
    $region125: #{tpu_custom_call.1} parent=1 // pred_fallthru
      _
    // Predicated region
    $region126: #{tpu_custom_call.1} parent=1 // pred_check
      _
    $region127: #{tpu_custom_call.1} parent=1 // pred_check_branch
      %224 = sbr.rel (0) target = $region129
    $region128: #{tpu_custom_call.1} parent=1 // pred_region
      %226 = dma.done [#allocation15], 512
    $region129: #{tpu_custom_call.1} parent=1 // pred_fallthru
      _
    // Predicated region
    $region130: #{tpu_custom_call.1} parent=1 // pred_check
      _
    $region131: #{tpu_custom_call.1} parent=1 // pred_check_branch
      %228 = sbr.rel (0) target = $region133
    $region132: #{tpu_custom_call.1} parent=1 // pred_region
      %230 = dma.done [#allocation18], 512
    $region133: #{tpu_custom_call.1} parent=1 // pred_fallthru
      _
    %v231 = vld [vmem:[#allocation2] sm:$0xff]
    %v232 = vld [vmem:[#allocation2 + $0x8] sm:$0xff]
    %v233 = vld [vmem:[#allocation5] sm:$0xff]
    %v234 = vld [vmem:[#allocation5 + $0x8] sm:$0xff]
    %v235 = vld [vmem:[%s2] sm:$0x1]
    %v236 = vld [vmem:[%s3] sm:$0xff]
    %v237 = vld [vmem:[%s3 + $0x8] sm:$0xff]
    %v238 = vld [vmem:[%s3 + $0x10] sm:$0xff]
    %v239 = vld [vmem:[%s3 + $0x18] sm:$0xff]
    %v240 = vld [vmem:[%s4] sm:$0x1]
    %v241 = vld [vmem:[#allocation7] sm:$0xff]
    %v242 = vld [vmem:[#allocation7 + $0x8] sm:$0xff]
    %v243 = vld [vmem:[#allocation7 + $0x10] sm:$0xff]
    %v244 = vld [vmem:[#allocation7 + $0x18] sm:$0xff]
    %v245 = vld [vmem:[%s6] sm:$0x1]
    %v246 = vld [vmem:[#allocation8] sm:$0xff]
    %v247 = vld [vmem:[#allocation8 + $0x8] sm:$0xff]
    %v248 = vld [vmem:[%s8] sm:$0x1]
    %v250 = vperm.slane %v235, 0
    %vm252 = vcmask 130048
    %v254 = vsel %vm252, %v231, 0
    %v257 = vsel %vm252, %v232, 0
    %259 = vmatpush.msra.mxu0 0.0
    %260 = vmatpush.msra.mxu0 0.0
    %261 = vmatpush.msra.mxu0 0.0
    %262 = vmatpush.msra.mxu0 0.0
    %263 = vmatpush.msra.mxu0 0.0
    %264 = vmatpush.msra.mxu0 0.0
    %265 = vmatpush.msra.mxu0 0.0
    %266 = vmatpush.msra.mxu0 0.0
    %267 = vmatpush.msra.mxu0 0.0
    %268 = vmatpush.msra.mxu0 0.0
    %269 = vmatpush.msra.mxu0 0.0
    %270 = vmatpush.msra.mxu0 0.0
    %271 = vmatpush.msra.mxu0 0.0
    %272 = vmatpush.msra.mxu0 0.0
    %273 = vmatpush.msra.mxu0 %v234
    %274 = vmatpush.msra.mxu0 %v233
    %275 = vmatmul.f32.gmra.mxu0 %v254
    %v276 = vpop.f32.mrf.mxu0
    %v277 = vadd.f32 %v250, %v276
    %278 = vmatmul.f32.gmra.mxu0 %v257
    %v279 = vpop.f32.mrf.mxu0
    %v280 = vadd.f32 %v250, %v279
    %281 = vdwg.mxu0
    %v282 = vmax.f32 %v277, 0.0
    %v283 = vmax.f32 %v280, 0.0
    %v285 = vperm.slane %v240, 0
    %vm287 = vcmask 261120
    %v289 = vsel %vm287, %v282, 0
    %v292 = vsel %vm287, %v283, 0
    %294 = vmatpush.msra.mxu0 0.0
    %295 = vmatpush.msra.mxu0 0.0
    %296 = vmatpush.msra.mxu0 0.0
    %297 = vmatpush.msra.mxu0 0.0
    %298 = vmatpush.msra.mxu0 0.0
    %299 = vmatpush.msra.mxu0 0.0
    %300 = vmatpush.msra.mxu0 0.0
    %301 = vmatpush.msra.mxu0 0.0
    %302 = vmatpush.msra.mxu0 0.0
    %303 = vmatpush.msra.mxu0 0.0
    %304 = vmatpush.msra.mxu0 0.0
    %305 = vmatpush.msra.mxu0 0.0
    %306 = vmatpush.msra.mxu0 %v239
    %307 = vmatpush.msra.mxu0 %v238
    %308 = vmatpush.msra.mxu0 %v237
    %309 = vmatpush.msra.mxu0 %v236
    %310 = vmatmul.f32.gmra.mxu0 %v289
    %v311 = vpop.f32.mrf.mxu0
    %v312 = vadd.f32 %v285, %v311
    %313 = vmatmul.f32.gmra.mxu0 %v292
    %v314 = vpop.f32.mrf.mxu0
    %v315 = vadd.f32 %v285, %v314
    %316 = vdwg.mxu0
    %318 = vrot.lane.b32.xlu0 %v312, 96
    %v319 = vpop.permute.xlu0 %318
    %v320 = vsel %vm287, %v312, 0
    %v322 = vsel %vm287, %v319, 0
    %324 = vmatpush.xpose.msra.mxu0 0.0
    %325 = vmatpush.xpose.msra.mxu0 0.0
    %326 = vmatpush.xpose.msra.mxu0 0.0
    %327 = vmatpush.xpose.msra.mxu0 0.0
    %328 = vmatpush.xpose.msra.mxu0 0.0
    %329 = vmatpush.xpose.msra.mxu0 0.0
    %330 = vmatpush.xpose.msra.mxu0 0.0
    %331 = vmatpush.xpose.msra.mxu0 0.0
    %332 = vmatpush.xpose.msra.mxu0 0.0
    %333 = vmatpush.xpose.msra.mxu0 0.0
    %334 = vmatpush.xpose.msra.mxu0 0.0
    %335 = vmatpush.xpose.msra.mxu0 0.0
    %336 = vmatpush.xpose.msra.mxu0 0.0
    %337 = vmatpush.xpose.msra.mxu0 0.0
    %338 = vmatpush.xpose.msra.mxu0 0.0
    %339 = vmatpush.xpose.msra.mxu0 %v322
    %340 = vmatmul.f32.gmra.mxu0 %v320
    %v341 = vpop.f32.mrf.mxu0
    %v342 = vadd.f32 0.0, %v341
    %343 = vdwg.mxu0
    %345 = vrot.lane.b32.xlu0 %v315, 96
    %v346 = vpop.permute.xlu0 %345
    %v347 = vsel %vm287, %v315, 0
    %v349 = vsel %vm287, %v346, 0
    %351 = vmatpush.xpose.msra.mxu0 0.0
    %352 = vmatpush.xpose.msra.mxu0 0.0
    %353 = vmatpush.xpose.msra.mxu0 0.0
    %354 = vmatpush.xpose.msra.mxu0 0.0
    %355 = vmatpush.xpose.msra.mxu0 0.0
    %356 = vmatpush.xpose.msra.mxu0 0.0
    %357 = vmatpush.xpose.msra.mxu0 0.0
    %358 = vmatpush.xpose.msra.mxu0 0.0
    %359 = vmatpush.xpose.msra.mxu0 0.0
    %360 = vmatpush.xpose.msra.mxu0 0.0
    %361 = vmatpush.xpose.msra.mxu0 0.0
    %362 = vmatpush.xpose.msra.mxu0 0.0
    %363 = vmatpush.xpose.msra.mxu0 0.0
    %364 = vmatpush.xpose.msra.mxu0 0.0
    %365 = vmatpush.xpose.msra.mxu0 0.0
    %366 = vmatpush.xpose.msra.mxu0 %v349
    %367 = vmatmul.f32.gmra.mxu0 %v347
    %v368 = vpop.f32.mrf.mxu0
    %v369 = vadd.f32 0.0, %v368
    %370 = vdwg.mxu0
    %v371 = vmul.f32 %v342, 0.17677669
    %v372 = vmul.f32 %v369, 0.17677669
    %vm373 = vcmask 64512
    %v374 = vsel %vm373, %v371, -inf
    %375 = vmax.xlane.f32.xlu0 %v374
    %v376 = vpop.xlane.xlu0 %375
    %v377 = vsel %vm373, %v372, -inf
    %378 = vmax.xlane.f32.xlu0 %v377
    %v379 = vpop.xlane.xlu0 %378
    %v380 = vsub.f32 %v371, %v376
    %v381 = vsub.f32 %v372, %v379
    %v382 = vmul.f32 %v380, 1.442695
    %v383 = vpow.pop %v382
    %v384 = vmul.f32 %v381, 1.442695
    %v385 = vpow.pop %v384
    %v386 = vsel %vm373, %v383, 0.0
    %387 = vadd.xlane.f32.xlu0 %v386
    %v388 = vpop.xlane.xlu0 %387
    %v389 = vsel %vm373, %v385, 0.0
    %390 = vadd.xlane.f32.xlu0 %v389
    %v391 = vpop.xlane.xlu0 %390
    %v392 = vrcp.pop %v388
    %v393 = vmul.f32 %v388, %v392
    %v394 = vsub.f32 1.0, %v393
    %v395 = vmul.f32 %v392, %v394
    %v396 = vadd.f32 %v392, %v395
    %vm397 = vweird.f32 %v388
    %vm398 = vweird.f32 %v392
    %vm399 = vmor %vm397, %vm398
    %v400 = vsel %vm399, %v392, %v396
    %v401 = vand.u32 2147483647, %v388
    %vm402 = vcmp.eq.f32.partialorder %v401, 8.507059e+37
    %v403 = vand.u32 %v388, 2147483648
    %v404 = vor.u32 1.1754944e-38, %v403
    %v405 = vsel %vm402, %v404, %v400
    %v406 = vrcp.pop %v391
    %v407 = vmul.f32 %v391, %v406
    %v408 = vsub.f32 1.0, %v407
    %v409 = vmul.f32 %v406, %v408
    %v410 = vadd.f32 %v406, %v409
    %vm411 = vweird.f32 %v391
    %vm412 = vweird.f32 %v406
    %vm413 = vmor %vm411, %vm412
    %v414 = vsel %vm413, %v406, %v410
    %v415 = vand.u32 2147483647, %v391
    %vm416 = vcmp.eq.f32.partialorder %v415, 8.507059e+37
    %v417 = vand.u32 %v391, 2147483648
    %v418 = vor.u32 1.1754944e-38, %v417
    %v419 = vsel %vm416, %v418, %v414
    %v420 = vmul.f32 %v383, %v405
    %v421 = vmul.f32 %v385, %v419
    %422 = vrot.lane.b32.xlu0 %v312, 64
    %v423 = vpop.permute.xlu0 %422
    %v426 = vsel %vm373, %v420, 0
    %428 = vmatpush.msra.mxu0 0.0
    %429 = vmatpush.msra.mxu0 0.0
    %430 = vmatpush.msra.mxu0 0.0
    %431 = vmatpush.msra.mxu0 0.0
    %432 = vmatpush.msra.mxu0 0.0
    %433 = vmatpush.msra.mxu0 0.0
    %434 = vmatpush.msra.mxu0 0.0
    %435 = vmatpush.msra.mxu0 0.0
    %436 = vmatpush.msra.mxu0 0.0
    %437 = vmatpush.msra.mxu0 0.0
    %438 = vmatpush.msra.mxu0 0.0
    %439 = vmatpush.msra.mxu0 0.0
    %440 = vmatpush.msra.mxu0 0.0
    %441 = vmatpush.msra.mxu0 0.0
    %442 = vmatpush.msra.mxu0 0.0
    %443 = vmatpush.msra.mxu0 %v423
    %444 = vmatmul.f32.gmra.mxu0 %v426
    %v445 = vpop.f32.mrf.mxu0
    %v446 = vadd.f32 0.0, %v445
    %447 = vdwg.mxu0
    %448 = vrot.lane.b32.xlu0 %v315, 64
    %v449 = vpop.permute.xlu0 %448
    %v452 = vsel %vm373, %v421, 0
    %454 = vmatpush.msra.mxu0 0.0
    %455 = vmatpush.msra.mxu0 0.0
    %456 = vmatpush.msra.mxu0 0.0
    %457 = vmatpush.msra.mxu0 0.0
    %458 = vmatpush.msra.mxu0 0.0
    %459 = vmatpush.msra.mxu0 0.0
    %460 = vmatpush.msra.mxu0 0.0
    %461 = vmatpush.msra.mxu0 0.0
    %462 = vmatpush.msra.mxu0 0.0
    %463 = vmatpush.msra.mxu0 0.0
    %464 = vmatpush.msra.mxu0 0.0
    %465 = vmatpush.msra.mxu0 0.0
    %466 = vmatpush.msra.mxu0 0.0
    %467 = vmatpush.msra.mxu0 0.0
    %468 = vmatpush.msra.mxu0 0.0
    %469 = vmatpush.msra.mxu0 %v449
    %470 = vmatmul.f32.gmra.mxu0 %v452
    %v471 = vpop.f32.mrf.mxu0
    %v472 = vadd.f32 0.0, %v471
    %473 = vdwg.mxu0
    %v475 = vperm.slane %v248, 0
    %477 = vmatpush.msra.mxu0 0.0
    %478 = vmatpush.msra.mxu0 0.0
    %479 = vmatpush.msra.mxu0 0.0
    %480 = vmatpush.msra.mxu0 0.0
    %481 = vmatpush.msra.mxu0 0.0
    %482 = vmatpush.msra.mxu0 0.0
    %483 = vmatpush.msra.mxu0 0.0
    %484 = vmatpush.msra.mxu0 0.0
    %485 = vmatpush.msra.mxu0 0.0
    %486 = vmatpush.msra.mxu0 0.0
    %487 = vmatpush.msra.mxu0 0.0
    %488 = vmatpush.msra.mxu0 0.0
    %489 = vmatpush.msra.mxu0 0.0
    %490 = vmatpush.msra.mxu0 0.0
    %491 = vmatpush.msra.mxu0 %v247
    %492 = vmatpush.msra.mxu0 %v246
    %493 = vmatmul.f32.gmra.mxu0 %v254
    %v494 = vpop.f32.mrf.mxu0
    %v495 = vadd.f32 %v475, %v494
    %496 = vmatmul.f32.gmra.mxu0 %v257
    %v497 = vpop.f32.mrf.mxu0
    %v498 = vadd.f32 %v475, %v497
    %499 = vdwg.mxu0
    %v500 = vadd.f32 %v446, %v495
    %v501 = vadd.f32 %v472, %v498
    %v503 = vperm.slane %v245, 0
    %v506 = vsel %vm287, %v500, 0
    %v509 = vsel %vm287, %v501, 0
    %511 = vmatpush.msra.mxu0 0.0
    %512 = vmatpush.msra.mxu0 0.0
    %513 = vmatpush.msra.mxu0 0.0
    %514 = vmatpush.msra.mxu0 0.0
    %515 = vmatpush.msra.mxu0 0.0
    %516 = vmatpush.msra.mxu0 0.0
    %517 = vmatpush.msra.mxu0 0.0
    %518 = vmatpush.msra.mxu0 0.0
    %519 = vmatpush.msra.mxu0 0.0
    %520 = vmatpush.msra.mxu0 0.0
    %521 = vmatpush.msra.mxu0 0.0
    %522 = vmatpush.msra.mxu0 0.0
    %523 = vmatpush.msra.mxu0 %v244
    %524 = vmatpush.msra.mxu0 %v243
    %525 = vmatpush.msra.mxu0 %v242
    %526 = vmatpush.msra.mxu0 %v241
    %527 = vmatmul.f32.gmra.mxu0 %v506
    %v528 = vpop.f32.mrf.mxu0
    %v529 = vadd.f32 %v503, %v528
    %530 = vmatmul.f32.gmra.mxu0 %v509
    %v531 = vpop.f32.mrf.mxu0
    %v532 = vadd.f32 %v503, %v531
    %533 = vdwg.mxu0
    %v534 = vmax.f32 %v529, 0.0
    %v535 = vmax.f32 %v532, 0.0
    %v536 = vld [vmem:[#allocation10] sm:$0xff]
    %v537 = vld [vmem:[#allocation10 + $0x8] sm:$0xff]
    %v538 = vld [vmem:[#allocation10 + $0x10] sm:$0xff]
    %v539 = vld [vmem:[#allocation10 + $0x18] sm:$0xff]
    %v540 = vld [vmem:[%s10] sm:$0x1]
    %v541 = vld [vmem:[#allocation11] sm:$0xff]
    %v542 = vld [vmem:[#allocation11 + $0x8] sm:$0xff]
    %v543 = vld [vmem:[#allocation11 + $0x10] sm:$0xff]
    %v544 = vld [vmem:[#allocation11 + $0x18] sm:$0xff]
    %v545 = vld [vmem:[%s12] sm:$0x1]
    %v546 = vld [vmem:[#allocation13] sm:$0xff]
    %v547 = vld [vmem:[#allocation13 + $0x8] sm:$0xff]
    %v548 = vld [vmem:[#allocation13 + $0x10] sm:$0xff]
    %v549 = vld [vmem:[#allocation13 + $0x18] sm:$0xff]
    %v550 = vld [vmem:[%s14] sm:$0x1]
    %v552 = vperm.slane %v540, 0
    %v555 = vsel %vm287, %v534, 0
    %v558 = vsel %vm287, %v535, 0
    %560 = vmatpush.msra.mxu0 0.0
    %561 = vmatpush.msra.mxu0 0.0
    %562 = vmatpush.msra.mxu0 0.0
    %563 = vmatpush.msra.mxu0 0.0
    %564 = vmatpush.msra.mxu0 0.0
    %565 = vmatpush.msra.mxu0 0.0
    %566 = vmatpush.msra.mxu0 0.0
    %567 = vmatpush.msra.mxu0 0.0
    %568 = vmatpush.msra.mxu0 0.0
    %569 = vmatpush.msra.mxu0 0.0
    %570 = vmatpush.msra.mxu0 0.0
    %571 = vmatpush.msra.mxu0 0.0
    %572 = vmatpush.msra.mxu0 %v539
    %573 = vmatpush.msra.mxu0 %v538
    %574 = vmatpush.msra.mxu0 %v537
    %575 = vmatpush.msra.mxu0 %v536
    %576 = vmatmul.f32.gmra.mxu0 %v555
    %v577 = vpop.f32.mrf.mxu0
    %v578 = vadd.f32 %v552, %v577
    %579 = vmatmul.f32.gmra.mxu0 %v558
    %v580 = vpop.f32.mrf.mxu0
    %v581 = vadd.f32 %v552, %v580
    %582 = vdwg.mxu0
    %v583 = vmax.f32 %v578, 0.0
    %v584 = vmax.f32 %v581, 0.0
    %v586 = vperm.slane %v545, 0
    %v589 = vsel %vm287, %v583, 0
    %v592 = vsel %vm287, %v584, 0
    %594 = vmatpush.msra.mxu0 0.0
    %595 = vmatpush.msra.mxu0 0.0
    %596 = vmatpush.msra.mxu0 0.0
    %597 = vmatpush.msra.mxu0 0.0
    %598 = vmatpush.msra.mxu0 0.0
    %599 = vmatpush.msra.mxu0 0.0
    %600 = vmatpush.msra.mxu0 0.0
    %601 = vmatpush.msra.mxu0 0.0
    %602 = vmatpush.msra.mxu0 0.0
    %603 = vmatpush.msra.mxu0 0.0
    %604 = vmatpush.msra.mxu0 0.0
    %605 = vmatpush.msra.mxu0 0.0
    %606 = vmatpush.msra.mxu0 %v544
    %607 = vmatpush.msra.mxu0 %v543
    %608 = vmatpush.msra.mxu0 %v542
    %609 = vmatpush.msra.mxu0 %v541
    %610 = vmatmul.f32.gmra.mxu0 %v589
    %v611 = vpop.f32.mrf.mxu0
    %v612 = vadd.f32 %v586, %v611
    %613 = vmatmul.f32.gmra.mxu0 %v592
    %v614 = vpop.f32.mrf.mxu0
    %v615 = vadd.f32 %v586, %v614
    %616 = vdwg.mxu0
    %618 = vrot.lane.b32.xlu0 %v612, 96
    %v619 = vpop.permute.xlu0 %618
    %v620 = vsel %vm287, %v612, 0
    %v622 = vsel %vm287, %v619, 0
    %624 = vmatpush.xpose.msra.mxu0 0.0
    %625 = vmatpush.xpose.msra.mxu0 0.0
    %626 = vmatpush.xpose.msra.mxu0 0.0
    %627 = vmatpush.xpose.msra.mxu0 0.0
    %628 = vmatpush.xpose.msra.mxu0 0.0
    %629 = vmatpush.xpose.msra.mxu0 0.0
    %630 = vmatpush.xpose.msra.mxu0 0.0
    %631 = vmatpush.xpose.msra.mxu0 0.0
    %632 = vmatpush.xpose.msra.mxu0 0.0
    %633 = vmatpush.xpose.msra.mxu0 0.0
    %634 = vmatpush.xpose.msra.mxu0 0.0
    %635 = vmatpush.xpose.msra.mxu0 0.0
    %636 = vmatpush.xpose.msra.mxu0 0.0
    %637 = vmatpush.xpose.msra.mxu0 0.0
    %638 = vmatpush.xpose.msra.mxu0 0.0
    %639 = vmatpush.xpose.msra.mxu0 %v622
    %640 = vmatmul.f32.gmra.mxu0 %v620
    %v641 = vpop.f32.mrf.mxu0
    %v642 = vadd.f32 0.0, %v641
    %643 = vdwg.mxu0
    %645 = vrot.lane.b32.xlu0 %v615, 96
    %v646 = vpop.permute.xlu0 %645
    %v647 = vsel %vm287, %v615, 0
    %v649 = vsel %vm287, %v646, 0
    %651 = vmatpush.xpose.msra.mxu0 0.0
    %652 = vmatpush.xpose.msra.mxu0 0.0
    %653 = vmatpush.xpose.msra.mxu0 0.0
    %654 = vmatpush.xpose.msra.mxu0 0.0
    %655 = vmatpush.xpose.msra.mxu0 0.0
    %656 = vmatpush.xpose.msra.mxu0 0.0
    %657 = vmatpush.xpose.msra.mxu0 0.0
    %658 = vmatpush.xpose.msra.mxu0 0.0
    %659 = vmatpush.xpose.msra.mxu0 0.0
    %660 = vmatpush.xpose.msra.mxu0 0.0
    %661 = vmatpush.xpose.msra.mxu0 0.0
    %662 = vmatpush.xpose.msra.mxu0 0.0
    %663 = vmatpush.xpose.msra.mxu0 0.0
    %664 = vmatpush.xpose.msra.mxu0 0.0
    %665 = vmatpush.xpose.msra.mxu0 0.0
    %666 = vmatpush.xpose.msra.mxu0 %v649
    %667 = vmatmul.f32.gmra.mxu0 %v647
    %v668 = vpop.f32.mrf.mxu0
    %v669 = vadd.f32 0.0, %v668
    %670 = vdwg.mxu0
    %v671 = vmul.f32 %v642, 0.17677669
    %v672 = vmul.f32 %v669, 0.17677669
    %v673 = vsel %vm373, %v671, -inf
    %674 = vmax.xlane.f32.xlu0 %v673
    %v675 = vpop.xlane.xlu0 %674
    %v676 = vsel %vm373, %v672, -inf
    %677 = vmax.xlane.f32.xlu0 %v676
    %v678 = vpop.xlane.xlu0 %677
    %v679 = vsub.f32 %v671, %v675
    %v680 = vsub.f32 %v672, %v678
    %v681 = vmul.f32 %v679, 1.442695
    %v682 = vpow.pop %v681
    %v683 = vmul.f32 %v680, 1.442695
    %v684 = vpow.pop %v683
    %v685 = vsel %vm373, %v682, 0.0
    %686 = vadd.xlane.f32.xlu0 %v685
    %v687 = vpop.xlane.xlu0 %686
    %v688 = vsel %vm373, %v684, 0.0
    %689 = vadd.xlane.f32.xlu0 %v688
    %v690 = vpop.xlane.xlu0 %689
    %v691 = vrcp.pop %v687
    %v692 = vmul.f32 %v687, %v691
    %v693 = vsub.f32 1.0, %v692
    %v694 = vmul.f32 %v691, %v693
    %v695 = vadd.f32 %v691, %v694
    %vm696 = vweird.f32 %v687
    %vm697 = vweird.f32 %v691
    %vm698 = vmor %vm696, %vm697
    %v699 = vsel %vm698, %v691, %v695
    %v700 = vand.u32 2147483647, %v687
    %vm701 = vcmp.eq.f32.partialorder %v700, 8.507059e+37
    %v702 = vand.u32 %v687, 2147483648
    %v703 = vor.u32 1.1754944e-38, %v702
    %v704 = vsel %vm701, %v703, %v699
    %v705 = vrcp.pop %v690
    %v706 = vmul.f32 %v690, %v705
    %v707 = vsub.f32 1.0, %v706
    %v708 = vmul.f32 %v705, %v707
    %v709 = vadd.f32 %v705, %v708
    %vm710 = vweird.f32 %v690
    %vm711 = vweird.f32 %v705
    %vm712 = vmor %vm710, %vm711
    %v713 = vsel %vm712, %v705, %v709
    %v714 = vand.u32 2147483647, %v690
    %vm715 = vcmp.eq.f32.partialorder %v714, 8.507059e+37
    %v716 = vand.u32 %v690, 2147483648
    %v717 = vor.u32 1.1754944e-38, %v716
    %v718 = vsel %vm715, %v717, %v713
    %v719 = vmul.f32 %v682, %v704
    %v720 = vmul.f32 %v684, %v718
    %721 = vrot.lane.b32.xlu0 %v612, 64
    %v722 = vpop.permute.xlu0 %721
    %v725 = vsel %vm373, %v719, 0
    %727 = vmatpush.msra.mxu0 0.0
    %728 = vmatpush.msra.mxu0 0.0
    %729 = vmatpush.msra.mxu0 0.0
    %730 = vmatpush.msra.mxu0 0.0
    %731 = vmatpush.msra.mxu0 0.0
    %732 = vmatpush.msra.mxu0 0.0
    %733 = vmatpush.msra.mxu0 0.0
    %734 = vmatpush.msra.mxu0 0.0
    %735 = vmatpush.msra.mxu0 0.0
    %736 = vmatpush.msra.mxu0 0.0
    %737 = vmatpush.msra.mxu0 0.0
    %738 = vmatpush.msra.mxu0 0.0
    %739 = vmatpush.msra.mxu0 0.0
    %740 = vmatpush.msra.mxu0 0.0
    %741 = vmatpush.msra.mxu0 0.0
    %742 = vmatpush.msra.mxu0 %v722
    %743 = vmatmul.f32.gmra.mxu0 %v725
    %v744 = vpop.f32.mrf.mxu0
    %v745 = vadd.f32 0.0, %v744
    %746 = vdwg.mxu0
    %747 = vrot.lane.b32.xlu0 %v615, 64
    %v748 = vpop.permute.xlu0 %747
    %v751 = vsel %vm373, %v720, 0
    %753 = vmatpush.msra.mxu0 0.0
    %754 = vmatpush.msra.mxu0 0.0
    %755 = vmatpush.msra.mxu0 0.0
    %756 = vmatpush.msra.mxu0 0.0
    %757 = vmatpush.msra.mxu0 0.0
    %758 = vmatpush.msra.mxu0 0.0
    %759 = vmatpush.msra.mxu0 0.0
    %760 = vmatpush.msra.mxu0 0.0
    %761 = vmatpush.msra.mxu0 0.0
    %762 = vmatpush.msra.mxu0 0.0
    %763 = vmatpush.msra.mxu0 0.0
    %764 = vmatpush.msra.mxu0 0.0
    %765 = vmatpush.msra.mxu0 0.0
    %766 = vmatpush.msra.mxu0 0.0
    %767 = vmatpush.msra.mxu0 0.0
    %768 = vmatpush.msra.mxu0 %v748
    %769 = vmatmul.f32.gmra.mxu0 %v751
    %v770 = vpop.f32.mrf.mxu0
    %v771 = vadd.f32 0.0, %v770
    %772 = vdwg.mxu0
    %v773 = vadd.f32 %v745, %v534
    %v774 = vadd.f32 %v771, %v535
    %v776 = vperm.slane %v550, 0
    %v779 = vsel %vm287, %v773, 0
    %v782 = vsel %vm287, %v774, 0
    %784 = vmatpush.msra.mxu0 0.0
    %785 = vmatpush.msra.mxu0 0.0
    %786 = vmatpush.msra.mxu0 0.0
    %787 = vmatpush.msra.mxu0 0.0
    %788 = vmatpush.msra.mxu0 0.0
    %789 = vmatpush.msra.mxu0 0.0
    %790 = vmatpush.msra.mxu0 0.0
    %791 = vmatpush.msra.mxu0 0.0
    %792 = vmatpush.msra.mxu0 0.0
    %793 = vmatpush.msra.mxu0 0.0
    %794 = vmatpush.msra.mxu0 0.0
    %795 = vmatpush.msra.mxu0 0.0
    %796 = vmatpush.msra.mxu0 %v549
    %797 = vmatpush.msra.mxu0 %v548
    %798 = vmatpush.msra.mxu0 %v547
    %799 = vmatpush.msra.mxu0 %v546
    %800 = vmatmul.f32.gmra.mxu0 %v779
    %v801 = vpop.f32.mrf.mxu0
    %v802 = vadd.f32 %v776, %v801
    %803 = vmatmul.f32.gmra.mxu0 %v782
    %v804 = vpop.f32.mrf.mxu0
    %v805 = vadd.f32 %v776, %v804
    %806 = vdwg.mxu0
    %v807 = vmax.f32 %v802, 0.0
    %v808 = vmax.f32 %v805, 0.0
    %v809 = vld [vmem:[#allocation14] sm:$0xff]
    %v810 = vld [vmem:[#allocation14 + $0x8] sm:$0xff]
    %v811 = vld [vmem:[#allocation14 + $0x10] sm:$0xff]
    %v812 = vld [vmem:[#allocation14 + $0x18] sm:$0xff]
    %v813 = vld [vmem:[%s16] sm:$0x1]
    %v814 = vld [vmem:[#allocation16] sm:$0xff]
    %v815 = vld [vmem:[#allocation16 + $0x8] sm:$0xff]
    %v816 = vld [vmem:[#allocation16 + $0x10] sm:$0xff]
    %v817 = vld [vmem:[#allocation16 + $0x18] sm:$0xff]
    %v818 = vld [vmem:[%s18] sm:$0x1]
    %v819 = vld [vmem:[#allocation17] sm:$0xff]
    %v820 = vld [vmem:[#allocation17 + $0x8] sm:$0xff]
    %v821 = vld [vmem:[#allocation17 + $0x10] sm:$0xff]
    %v822 = vld [vmem:[#allocation17 + $0x18] sm:$0xff]
    %v823 = vld [vmem:[%s20] sm:$0x1]
    %v825 = vperm.slane %v813, 0
    %v828 = vsel %vm287, %v807, 0
    %v831 = vsel %vm287, %v808, 0
    %833 = vmatpush.msra.mxu0 0.0
    %834 = vmatpush.msra.mxu0 0.0
    %835 = vmatpush.msra.mxu0 0.0
    %836 = vmatpush.msra.mxu0 0.0
    %837 = vmatpush.msra.mxu0 0.0
    %838 = vmatpush.msra.mxu0 0.0
    %839 = vmatpush.msra.mxu0 0.0
    %840 = vmatpush.msra.mxu0 0.0
    %841 = vmatpush.msra.mxu0 0.0
    %842 = vmatpush.msra.mxu0 0.0
    %843 = vmatpush.msra.mxu0 0.0
    %844 = vmatpush.msra.mxu0 0.0
    %845 = vmatpush.msra.mxu0 %v812
    %846 = vmatpush.msra.mxu0 %v811
    %847 = vmatpush.msra.mxu0 %v810
    %848 = vmatpush.msra.mxu0 %v809
    %849 = vmatmul.f32.gmra.mxu0 %v828
    %v850 = vpop.f32.mrf.mxu0
    %v851 = vadd.f32 %v825, %v850
    %852 = vmatmul.f32.gmra.mxu0 %v831
    %v853 = vpop.f32.mrf.mxu0
    %v854 = vadd.f32 %v825, %v853
    %855 = vdwg.mxu0
    %v856 = vmax.f32 %v851, 0.0
    %v857 = vmax.f32 %v854, 0.0
    %v859 = vperm.slane %v818, 0
    %v862 = vsel %vm287, %v856, 0
    %v865 = vsel %vm287, %v857, 0
    %867 = vmatpush.msra.mxu0 0.0
    %868 = vmatpush.msra.mxu0 0.0
    %869 = vmatpush.msra.mxu0 0.0
    %870 = vmatpush.msra.mxu0 0.0
    %871 = vmatpush.msra.mxu0 0.0
    %872 = vmatpush.msra.mxu0 0.0
    %873 = vmatpush.msra.mxu0 0.0
    %874 = vmatpush.msra.mxu0 0.0
    %875 = vmatpush.msra.mxu0 0.0
    %876 = vmatpush.msra.mxu0 0.0
    %877 = vmatpush.msra.mxu0 0.0
    %878 = vmatpush.msra.mxu0 0.0
    %879 = vmatpush.msra.mxu0 %v817
    %880 = vmatpush.msra.mxu0 %v816
    %881 = vmatpush.msra.mxu0 %v815
    %882 = vmatpush.msra.mxu0 %v814
    %883 = vmatmul.f32.gmra.mxu0 %v862
    %v884 = vpop.f32.mrf.mxu0
    %v885 = vadd.f32 %v859, %v884
    %886 = vmatmul.f32.gmra.mxu0 %v865
    %v887 = vpop.f32.mrf.mxu0
    %v888 = vadd.f32 %v859, %v887
    %889 = vdwg.mxu0
    %891 = vrot.lane.b32.xlu0 %v885, 96
    %v892 = vpop.permute.xlu0 %891
    %v893 = vsel %vm287, %v885, 0
    %v895 = vsel %vm287, %v892, 0
    %897 = vmatpush.xpose.msra.mxu0 0.0
    %898 = vmatpush.xpose.msra.mxu0 0.0
    %899 = vmatpush.xpose.msra.mxu0 0.0
    %900 = vmatpush.xpose.msra.mxu0 0.0
    %901 = vmatpush.xpose.msra.mxu0 0.0
    %902 = vmatpush.xpose.msra.mxu0 0.0
    %903 = vmatpush.xpose.msra.mxu0 0.0
    %904 = vmatpush.xpose.msra.mxu0 0.0
    %905 = vmatpush.xpose.msra.mxu0 0.0
    %906 = vmatpush.xpose.msra.mxu0 0.0
    %907 = vmatpush.xpose.msra.mxu0 0.0
    %908 = vmatpush.xpose.msra.mxu0 0.0
    %909 = vmatpush.xpose.msra.mxu0 0.0
    %910 = vmatpush.xpose.msra.mxu0 0.0
    %911 = vmatpush.xpose.msra.mxu0 0.0
    %912 = vmatpush.xpose.msra.mxu0 %v895
    %913 = vmatmul.f32.gmra.mxu0 %v893
    %v914 = vpop.f32.mrf.mxu0
    %v915 = vadd.f32 0.0, %v914
    %916 = vdwg.mxu0
    %918 = vrot.lane.b32.xlu0 %v888, 96
    %v919 = vpop.permute.xlu0 %918
    %v920 = vsel %vm287, %v888, 0
    %v922 = vsel %vm287, %v919, 0
    %924 = vmatpush.xpose.msra.mxu0 0.0
    %925 = vmatpush.xpose.msra.mxu0 0.0
    %926 = vmatpush.xpose.msra.mxu0 0.0
    %927 = vmatpush.xpose.msra.mxu0 0.0
    %928 = vmatpush.xpose.msra.mxu0 0.0
    %929 = vmatpush.xpose.msra.mxu0 0.0
    %930 = vmatpush.xpose.msra.mxu0 0.0
    %931 = vmatpush.xpose.msra.mxu0 0.0
    %932 = vmatpush.xpose.msra.mxu0 0.0
    %933 = vmatpush.xpose.msra.mxu0 0.0
    %934 = vmatpush.xpose.msra.mxu0 0.0
    %935 = vmatpush.xpose.msra.mxu0 0.0
    %936 = vmatpush.xpose.msra.mxu0 0.0
    %937 = vmatpush.xpose.msra.mxu0 0.0
    %938 = vmatpush.xpose.msra.mxu0 0.0
    %939 = vmatpush.xpose.msra.mxu0 %v922
    %940 = vmatmul.f32.gmra.mxu0 %v920
    %v941 = vpop.f32.mrf.mxu0
    %v942 = vadd.f32 0.0, %v941
    %943 = vdwg.mxu0
    %v944 = vmul.f32 %v915, 0.17677669
    %v945 = vmul.f32 %v942, 0.17677669
    %v946 = vsel %vm373, %v944, -inf
    %947 = vmax.xlane.f32.xlu0 %v946
    %v948 = vpop.xlane.xlu0 %947
    %v949 = vsel %vm373, %v945, -inf
    %950 = vmax.xlane.f32.xlu0 %v949
    %v951 = vpop.xlane.xlu0 %950
    %v952 = vsub.f32 %v944, %v948
    %v953 = vsub.f32 %v945, %v951
    %v954 = vmul.f32 %v952, 1.442695
    %v955 = vpow.pop %v954
    %v956 = vmul.f32 %v953, 1.442695
    %v957 = vpow.pop %v956
    %v958 = vsel %vm373, %v955, 0.0
    %959 = vadd.xlane.f32.xlu0 %v958
    %v960 = vpop.xlane.xlu0 %959
    %v961 = vsel %vm373, %v957, 0.0
    %962 = vadd.xlane.f32.xlu0 %v961
    %v963 = vpop.xlane.xlu0 %962
    %v964 = vrcp.pop %v960
    %v965 = vmul.f32 %v960, %v964
    %v966 = vsub.f32 1.0, %v965
    %v967 = vmul.f32 %v964, %v966
    %v968 = vadd.f32 %v964, %v967
    %vm969 = vweird.f32 %v960
    %vm970 = vweird.f32 %v964
    %vm971 = vmor %vm969, %vm970
    %v972 = vsel %vm971, %v964, %v968
    %v973 = vand.u32 2147483647, %v960
    %vm974 = vcmp.eq.f32.partialorder %v973, 8.507059e+37
    %v975 = vand.u32 %v960, 2147483648
    %v976 = vor.u32 1.1754944e-38, %v975
    %v977 = vsel %vm974, %v976, %v972
    %v978 = vrcp.pop %v963
    %v979 = vmul.f32 %v963, %v978
    %v980 = vsub.f32 1.0, %v979
    %v981 = vmul.f32 %v978, %v980
    %v982 = vadd.f32 %v978, %v981
    %vm983 = vweird.f32 %v963
    %vm984 = vweird.f32 %v978
    %vm985 = vmor %vm983, %vm984
    %v986 = vsel %vm985, %v978, %v982
    %v987 = vand.u32 2147483647, %v963
    %vm988 = vcmp.eq.f32.partialorder %v987, 8.507059e+37
    %v989 = vand.u32 %v963, 2147483648
    %v990 = vor.u32 1.1754944e-38, %v989
    %v991 = vsel %vm988, %v990, %v986
    %v992 = vmul.f32 %v955, %v977
    %v993 = vmul.f32 %v957, %v991
    %994 = vrot.lane.b32.xlu0 %v885, 64
    %v995 = vpop.permute.xlu0 %994
    %v998 = vsel %vm373, %v992, 0
    %1000 = vmatpush.msra.mxu0 0.0
    %1001 = vmatpush.msra.mxu0 0.0
    %1002 = vmatpush.msra.mxu0 0.0
    %1003 = vmatpush.msra.mxu0 0.0
    %1004 = vmatpush.msra.mxu0 0.0
    %1005 = vmatpush.msra.mxu0 0.0
    %1006 = vmatpush.msra.mxu0 0.0
    %1007 = vmatpush.msra.mxu0 0.0
    %1008 = vmatpush.msra.mxu0 0.0
    %1009 = vmatpush.msra.mxu0 0.0
    %1010 = vmatpush.msra.mxu0 0.0
    %1011 = vmatpush.msra.mxu0 0.0
    %1012 = vmatpush.msra.mxu0 0.0
    %1013 = vmatpush.msra.mxu0 0.0
    %1014 = vmatpush.msra.mxu0 0.0
    %1015 = vmatpush.msra.mxu0 %v995
    %1016 = vmatmul.f32.gmra.mxu0 %v998
    %v1017 = vpop.f32.mrf.mxu0
    %v1018 = vadd.f32 0.0, %v1017
    %1019 = vdwg.mxu0
    %1020 = vrot.lane.b32.xlu0 %v888, 64
    %v1021 = vpop.permute.xlu0 %1020
    %v1024 = vsel %vm373, %v993, 0
    %1026 = vmatpush.msra.mxu0 0.0
    %1027 = vmatpush.msra.mxu0 0.0
    %1028 = vmatpush.msra.mxu0 0.0
    %1029 = vmatpush.msra.mxu0 0.0
    %1030 = vmatpush.msra.mxu0 0.0
    %1031 = vmatpush.msra.mxu0 0.0
    %1032 = vmatpush.msra.mxu0 0.0
    %1033 = vmatpush.msra.mxu0 0.0
    %1034 = vmatpush.msra.mxu0 0.0
    %1035 = vmatpush.msra.mxu0 0.0
    %1036 = vmatpush.msra.mxu0 0.0
    %1037 = vmatpush.msra.mxu0 0.0
    %1038 = vmatpush.msra.mxu0 0.0
    %1039 = vmatpush.msra.mxu0 0.0
    %1040 = vmatpush.msra.mxu0 0.0
    %1041 = vmatpush.msra.mxu0 %v1021
    %1042 = vmatmul.f32.gmra.mxu0 %v1024
    %v1043 = vpop.f32.mrf.mxu0
    %v1044 = vadd.f32 0.0, %v1043
    %1045 = vdwg.mxu0
    %v1046 = vadd.f32 %v1018, %v807
    %v1047 = vadd.f32 %v1044, %v808
    %v1049 = vperm.slane %v823, 0
    %v1052 = vsel %vm287, %v1046, 0
    %v1055 = vsel %vm287, %v1047, 0
    %1057 = vmatpush.msra.mxu0 0.0
    %1058 = vmatpush.msra.mxu0 0.0
    %1059 = vmatpush.msra.mxu0 0.0
    %1060 = vmatpush.msra.mxu0 0.0
    %1061 = vmatpush.msra.mxu0 0.0
    %1062 = vmatpush.msra.mxu0 0.0
    %1063 = vmatpush.msra.mxu0 0.0
    %1064 = vmatpush.msra.mxu0 0.0
    %1065 = vmatpush.msra.mxu0 0.0
    %1066 = vmatpush.msra.mxu0 0.0
    %1067 = vmatpush.msra.mxu0 0.0
    %1068 = vmatpush.msra.mxu0 0.0
    %1069 = vmatpush.msra.mxu0 %v822
    %1070 = vmatpush.msra.mxu0 %v821
    %1071 = vmatpush.msra.mxu0 %v820
    %1072 = vmatpush.msra.mxu0 %v819
    %1073 = vmatmul.f32.gmra.mxu0 %v1052
    %v1074 = vpop.f32.mrf.mxu0
    %v1075 = vadd.f32 %v1049, %v1074
    %1076 = vmatmul.f32.gmra.mxu0 %v1055
    %v1077 = vpop.f32.mrf.mxu0
    %v1078 = vadd.f32 %v1049, %v1077
    %1079 = vdwg.mxu0
    %v1080 = vmax.f32 %v1075, 0.0
    %v1081 = vmax.f32 %v1078, 0.0
    %v1082 = vld [vmem:[%s21] sm:$0xff]
    %v1083 = vld [vmem:[%s21 + $0x8] sm:$0xff]
    %v1084 = vld [vmem:[%s21 + $0x10] sm:$0xff]
    %v1085 = vld [vmem:[%s21 + $0x18] sm:$0xff]
    %v1086 = vld [vmem:[%s22] sm:$0x1]
    %v1088 = vperm.slane %v1086, 0
    %v1091 = vsel %vm287, %v1080, 0
    %v1094 = vsel %vm287, %v1081, 0
    %1096 = vmatpush.msra.mxu0 0.0
    %1097 = vmatpush.msra.mxu0 0.0
    %1098 = vmatpush.msra.mxu0 0.0
    %1099 = vmatpush.msra.mxu0 0.0
    %1100 = vmatpush.msra.mxu0 0.0
    %1101 = vmatpush.msra.mxu0 0.0
    %1102 = vmatpush.msra.mxu0 0.0
    %1103 = vmatpush.msra.mxu0 0.0
    %1104 = vmatpush.msra.mxu0 0.0
    %1105 = vmatpush.msra.mxu0 0.0
    %1106 = vmatpush.msra.mxu0 0.0
    %1107 = vmatpush.msra.mxu0 0.0
    %1108 = vmatpush.msra.mxu0 %v1085
    %1109 = vmatpush.msra.mxu0 %v1084
    %1110 = vmatpush.msra.mxu0 %v1083
    %1111 = vmatpush.msra.mxu0 %v1082
    %1112 = vmatmul.f32.gmra.mxu0 %v1091
    %v1113 = vpop.f32.mrf.mxu0
    %v1114 = vadd.f32 %v1088, %v1113
    %1115 = vmatmul.f32.gmra.mxu0 %v1094
    %v1116 = vpop.f32.mrf.mxu0
    %v1117 = vadd.f32 %v1088, %v1116
    %1118 = vdwg.mxu0
    %v1119 = vmul.f32 %v1114, %v1114
    %v1120 = vmul.f32 %v1117, %v1117
    %v1121 = vsel %vm373, %v1119, 0.0
    %1122 = vadd.xlane.f32.xlu0 %v1121
    %v1123 = vpop.xlane.xlu0 %1122
    %v1124 = vsel %vm373, %v1120, 0.0
    %1125 = vadd.xlane.f32.xlu0 %v1124
    %v1126 = vpop.xlane.xlu0 %1125
    %v1127 = vrsqrt.pop %v1123
    %v1128 = vmul.f32 %v1127, %v1123
    %v1129 = vmul.f32 %v1128, %v1127
    %v1130 = vmul.f32 0.5, %v1129
    %v1131 = vsub.f32 1.5, %v1130
    %v1132 = vmul.f32 %v1127, %v1131
    %v1133 = vmul.f32 %v1123, %v1132
    %vm1134 = vcmp.eq.f32.partialorder %v1123, inf
    %v1135 = vsel %vm1134, %v1123, %v1133
    %vm1136 = vcmp.eq.f32.partialorder %v1123, 0.0
    %v1137 = vand.u32 %v1123, 2147483648
    %v1138 = vsel %vm1136, %v1137, %v1135
    %v1139 = vrsqrt.pop %v1126
    %v1140 = vmul.f32 %v1139, %v1126
    %v1141 = vmul.f32 %v1140, %v1139
    %v1142 = vmul.f32 0.5, %v1141
    %v1143 = vsub.f32 1.5, %v1142
    %v1144 = vmul.f32 %v1139, %v1143
    %v1145 = vmul.f32 %v1126, %v1144
    %vm1146 = vcmp.eq.f32.partialorder %v1126, inf
    %v1147 = vsel %vm1146, %v1126, %v1145
    %vm1148 = vcmp.eq.f32.partialorder %v1126, 0.0
    %v1149 = vand.u32 %v1126, 2147483648
    %v1150 = vsel %vm1148, %v1149, %v1147
    %v1151 = vmax.f32 %v1138, 1e-12
    %v1152 = vmax.f32 %v1150, 1e-12
    %v1153 = vrcp.pop %v1151
    %v1154 = vmul.f32 %v1151, %v1153
    %v1155 = vsub.f32 1.0, %v1154
    %v1156 = vmul.f32 %v1153, %v1155
    %v1157 = vadd.f32 %v1153, %v1156
    %vm1158 = vweird.f32 %v1151
    %vm1159 = vweird.f32 %v1153
    %vm1160 = vmor %vm1158, %vm1159
    %v1161 = vsel %vm1160, %v1153, %v1157
    %v1162 = vand.u32 2147483647, %v1151
    %vm1163 = vcmp.eq.f32.partialorder %v1162, 8.507059e+37
    %v1164 = vand.u32 %v1151, 2147483648
    %v1165 = vor.u32 1.1754944e-38, %v1164
    %v1166 = vsel %vm1163, %v1165, %v1161
    %v1167 = vrcp.pop %v1152
    %v1168 = vmul.f32 %v1152, %v1167
    %v1169 = vsub.f32 1.0, %v1168
    %v1170 = vmul.f32 %v1167, %v1169
    %v1171 = vadd.f32 %v1167, %v1170
    %vm1172 = vweird.f32 %v1152
    %vm1173 = vweird.f32 %v1167
    %vm1174 = vmor %vm1172, %vm1173
    %v1175 = vsel %vm1174, %v1167, %v1171
    %v1176 = vand.u32 2147483647, %v1152
    %vm1177 = vcmp.eq.f32.partialorder %v1176, 8.507059e+37
    %v1178 = vand.u32 %v1152, 2147483648
    %v1179 = vor.u32 1.1754944e-38, %v1178
    %v1180 = vsel %vm1177, %v1179, %v1175
    %v1181 = vmul.f32 %v1114, %v1166
    %v1182 = vmul.f32 %v1117, %v1180
    %1183 = vst.msk [vmem:[#allocation19] sm:$0xff] %vm373, %v1181
    %1184 = vst.msk [vmem:[#allocation19 + $0x8] sm:$0xff] %vm373, %v1182
    // Predicated region
    $region134: #{tpu_custom_call.1} parent=1 // pred_check
      _
    $region135: #{tpu_custom_call.1} parent=1 // pred_check_branch
      %1186 = sbr.rel (0) target = $region137
    $region136: #{tpu_custom_call.1} parent=1 // pred_region
      %1188 = vsyncadd [#allocation4], 0
      %s1189 = sshll.u32 [#allocation19], 4
      %s1190 = int_to_ptr.vmem [resolvable:$true] %s1189
      %s1191 = sshll.u32 %s23, 4
      %s1192 = int_to_ptr.hbm [resolvable:$true] %s1191
      %1197 = dma.vmem_to_hbm [thread:$0]  %s1190, 256, %s1192, [#allocation4], 128, 128, 8
    $region137: #{tpu_custom_call.1} parent=1 // pred_fallthru
      _
    // Predicated region
    $region138: #{tpu_custom_call.1} parent=1 // pred_check
      _
    $region139: #{tpu_custom_call.1} parent=1 // pred_check_branch
      %1199 = sbr.rel (0) target = $region141
    $region140: #{tpu_custom_call.1} parent=1 // pred_region
      %1201 = dma.done [#allocation4], 256
    $region141: #{tpu_custom_call.1} parent=1 // pred_fallthru
      _
    %1202 = vsyncpa [#allocation3], 1
    %1203 = vsyncpa [#allocation6], 1
    %1204 = vsyncpa [#allocation9], 1
    %1205 = vsyncpa [#allocation12], 1
    %1206 = vsyncpa [#allocation15], 1
    %1207 = vsyncpa [#allocation18], 1
    %1208 = vsyncpa [#allocation4], 1

</llo_original>
